<compile_context>
chip_gen: v7x
topology: tpu7x:2x2x1
jax: 0.10.0
libtpu: 0.0.40
codegen_flags: <defaults>
</compile_context>

<pallas_src>
import math

import jax
import jax.numpy as jnp
from jax.experimental import pallas as pl
from jax.experimental.pallas import tpu as pltpu  # noqa: F401  (no scratch needed in this version)


def _fused_lstm2_kernel(xp_ref, wfused_ref, bcomb_ref, out_ref):
    """Refs:
         xp_ref    : (T, B, 8H)  gate pre-activations in interleaved layout
                     [x_t·Wih0^T + b0 | b1] per gate block [i | f | g | o]
         wfused_ref: (2H, 8H)    fused recurrent weights:
                     rows 0:H   -> [Whh0^T | Wih1^T] per gate block
                     rows H:2H  -> [  0    | Whh1^T] per gate block
         bcomb_ref : (1, 8H)     combined biases [b0 | b1] per gate block
         out_ref   : (B, T, H)   layer-1 hidden states (batch-first module output)
    """
    T, B, G8 = xp_ref.shape
    H2 = G8 // 4          # 2H = 128 : [layer0 | layer1] lanes
    H = H2 // 2           # 64

    def gate_math(gates, c_prev):
        # gates: (B, 8H) with vreg-aligned 128-lane blocks [i|f|g|o], each block
        # holding [layer0 | layer1] lanes.  PyTorch gate order i, f, g, o.
        i_g = jax.nn.sigmoid(gates[:, 0 * H2:1 * H2])
        f_g = jax.nn.sigmoid(gates[:, 1 * H2:2 * H2])
        g_g = jnp.tanh(gates[:, 2 * H2:3 * H2])
        o_g = jax.nn.sigmoid(gates[:, 3 * H2:4 * H2])
        c_new = f_g * c_prev + i_g * g_g
        h_new = o_g * jnp.tanh(c_new)
        return h_new, c_new

    # ---- prologue: layer-0 time step 0 (h0 = c0 = 0 -> no matmul needed) ----------
    h, c = gate_math(xp_ref[0], jnp.zeros((B, H2), jnp.float32))
    # keep only the layer-0 lanes; layer-1 state must start at exactly zero
    keep_l0 = jax.lax.broadcasted_iota(jnp.int32, (B, H2), 1) < H
    h = jnp.where(keep_l0, h, 0.0)
    c = jnp.where(keep_l0, c, 0.0)

    # ---- fused wavefront recurrence -------------------------------------------------
    # At step s the carry is h = [h0_{s-1} | h1_{s-2}], c = [c0_{s-1} | c1_{s-2}];
    # one matmul produces layer-0 gates for time s AND layer-1 gates for time s-1.
    # Fully unrolled with static indices (T is small) so the output store is a static
    # batch-first write and h/c never leave vregs.
    for s in range(1, T + 1):
        add = xp_ref[s] if s < T else bcomb_ref[...]   # s == T: layer-1-only step
        gates = add + jnp.dot(h, wfused_ref[...],
                              preferred_element_type=jnp.float32)
        h, c = gate_math(gates, c)
        # layer-1 hidden state at time s-1 (lanes H:2H); layer-0 half of the final
        # step is computed but never consumed.
        out_ref[:, s - 1, :] = h[:, H:H2]


def prepare_rnn_params(params):
    """One-time parameter prep: build kernel-ready fused / gate-interleaved layouts.

    params: list of 2 tuples (w_ih, w_hh, b_ih, b_hh) with PyTorch nn.LSTM shapes.
    Returns dict of arrays only (safe to pass through jax.jit).
    """
    assert len(params) == 2, "fused kernel is specialized for num_layers=2"
    (w_ih0, w_hh0, b_ih0, b_hh0), (w_ih1, w_hh1, b_ih1, b_hh1) = params
    H = w_hh0.shape[1]
    I = w_ih0.shape[1]
    b0 = (b_ih0 + b_hh0).astype(jnp.float32)
    b1 = (b_ih1 + b_hh1).astype(jnp.float32)

    w_in = jnp.zeros((I, 8 * H), jnp.float32)       # layer-0 input proj (layer-1 cols = 0)
    w_fused = jnp.zeros((2 * H, 8 * H), jnp.float32)
    b_comb = jnp.zeros((8 * H,), jnp.float32)
    for k in range(4):                               # PyTorch gate order i, f, g, o
        rows = slice(k * H, (k + 1) * H)             # gate-k rows of PyTorch weights
        c0 = slice(2 * k * H, 2 * k * H + H)         # layer-0 lanes of gate block k
        c1 = slice(2 * k * H + H, 2 * (k + 1) * H)   # layer-1 lanes of gate block k
        w_in = w_in.at[:, c0].set(w_ih0[rows].T.astype(jnp.float32))
        w_fused = w_fused.at[0:H, c0].set(w_hh0[rows].T.astype(jnp.float32))
        w_fused = w_fused.at[0:H, c1].set(w_ih1[rows].T.astype(jnp.float32))
        w_fused = w_fused.at[H:2 * H, c1].set(w_hh1[rows].T.astype(jnp.float32))
        b_comb = b_comb.at[c0].set(b0[rows])
        b_comb = b_comb.at[c1].set(b1[rows])

    return {"w_in": w_in, "w_fused": w_fused, "b_comb": b_comb.reshape(1, 8 * H)}


def rnn_forward(x, prepped):
    """Pallas implementation of RNN.forward (eval mode: dropout = identity).

    x      : (B, T, input_size), batch_first like the PyTorch module.
    prepped: output of prepare_rnn_params (one-time, outside the forward path).
    Returns (B, T, hidden_size).
    """
    B, T, _ = x.shape
    H = prepped["w_fused"].shape[0] // 2

    # Single fused XLA op on the call path: layer-0 input projection + combined
    # biases (b0 in the layer-0 lanes, b1 in the layer-1 lanes) + time-major layout,
    # already in the kernel's gate-interleaved column order.
    xp = jnp.einsum("bti,ig->tbg", x.astype(jnp.float32), prepped["w_in"]) \
         + prepped["b_comb"]                                           # (T, B, 8H)

    out = pl.pallas_call(
        _fused_lstm2_kernel,
        out_shape=jax.ShapeDtypeStruct((B, T, H), jnp.float32),
    )(xp, prepped["w_fused"], prepped["b_comb"])

    # Dropout(0.2) is identity in eval mode; output is already batch-first.
    return out


def rnn_forward_ref(x_bti, params):
    """Pure-JAX reference (same math as PyTorch nn.LSTM) for correctness checking."""
    h_seq = x_bti
    B, T, _ = x_bti.shape
    for (w_ih, w_hh, b_ih, b_hh) in params:
        H = w_hh.shape[1]
        h = jnp.zeros((B, H), jnp.float32)
        c = jnp.zeros((B, H), jnp.float32)
        outs = []
        for t in range(T):
            gates = h_seq[:, t] @ w_ih.T + b_ih + h @ w_hh.T + b_hh
            i_g = jax.nn.sigmoid(gates[:, :H])
            f_g = jax.nn.sigmoid(gates[:, H:2 * H])
            g_g = jnp.tanh(gates[:, 2 * H:3 * H])
            o_g = jax.nn.sigmoid(gates[:, 3 * H:])
            c = f_g * c + i_g * g_g
            h = o_g * jnp.tanh(c)
            outs.append(h)
        h_seq = jnp.stack(outs, axis=1)
    return h_seq


def init_lstm_params(key, input_size, hidden_size, num_layers):
    """Deterministic init matching PyTorch nn.LSTM parameter shapes:
       per layer: weight_ih (4H, in), weight_hh (4H, H), bias_ih (4H,), bias_hh (4H,)."""
    params = []
    k = 1.0 / math.sqrt(hidden_size)
    in_sz = input_size
    for _ in range(num_layers):
        key, k1, k2, k3, k4 = jax.random.split(key, 5)
        w_ih = jax.random.uniform(k1, (4 * hidden_size, in_sz), jnp.float32, -k, k)
        w_hh = jax.random.uniform(k2, (4 * hidden_size, hidden_size), jnp.float32, -k, k)
        b_ih = jax.random.uniform(k3, (4 * hidden_size,), jnp.float32, -k, k)
        b_hh = jax.random.uniform(k4, (4 * hidden_size,), jnp.float32, -k, k)
        params.append((w_ih, w_hh, b_ih, b_hh))
        in_sz = hidden_size
    return params


if __name__ == "__main__":
    INPUT_SIZE = 26
    HIDDEN_SIZE = 64
    NUM_LAYERS = 2
    BATCH = 2
    SEQ = 8

    key = jax.random.PRNGKey(0)
    key, xkey = jax.random.split(key)
    x = jax.random.normal(xkey, (BATCH, SEQ, INPUT_SIZE), dtype=jnp.float32)
    params = init_lstm_params(key, INPUT_SIZE, HIDDEN_SIZE, NUM_LAYERS)

    # One-time weight prep (outside the per-call forward path).
    prepped = prepare_rnn_params(params)

    fwd = jax.jit(rnn_forward)
    out = jax.block_until_ready(fwd(x, prepped))
    assert out.shape == (BATCH, SEQ, HIDDEN_SIZE), out.shape

    ref = jax.block_until_ready(rnn_forward_ref(x, params))
    assert jnp.allclose(out, ref, rtol=1e-3, atol=1e-3), "mismatch vs reference"

    print("KERNEL_OK")
</pallas_src>

<mosaic_0001>
module attributes {stable_mosaic.version = 11 : i64} {
  func.func @_fused_lstm2_kernel(%arg0: memref<8x2x512xf32, #tpu.memory_space<vmem>>, %arg1: memref<128x512xf32, #tpu.memory_space<vmem>>, %arg2: memref<1x512xf32, #tpu.memory_space<vmem>>, %arg3: memref<2x8x64xf32, #tpu.memory_space<vmem>>) attributes {dimension_semantics = [], scalar_prefetch = 0 : i64, scratch_operands = 0 : i64, tpu.core_type = #tpu.core_type<tc>} {
    %c0 = arith.constant 0 : index
    %c0_0 = arith.constant 0 : index
    %c0_1 = arith.constant 0 : index
    %0 = vector.load %arg0[%c0, %c0_0, %c0_1] : memref<8x2x512xf32, #tpu.memory_space<vmem>>, vector<1x2x512xf32>
    %1 = vector.shape_cast %0 : vector<1x2x512xf32> to vector<2x512xf32>
    %cst = arith.constant 0.000000e+00 : f32
    %2 = vector.broadcast %cst : f32 to vector<2x128xf32>
    %3 = vector.extract_strided_slice %1 {offsets = [0, 0], sizes = [2, 128], strides = [1, 1]} : vector<2x512xf32> to vector<2x128xf32>
    %4 = arith.negf %3 : vector<2x128xf32>
    %5 = math.exp %4 : vector<2x128xf32>
    %cst_2 = arith.constant 1.000000e+00 : f32
    %6 = vector.broadcast %cst_2 : f32 to vector<2x128xf32>
    %7 = arith.addf %6, %5 : vector<2x128xf32>
    %8 = arith.divf %6, %7 : vector<2x128xf32>
    %9 = vector.extract_strided_slice %1 {offsets = [0, 128], sizes = [2, 128], strides = [1, 1]} : vector<2x512xf32> to vector<2x128xf32>
    %10 = arith.negf %9 : vector<2x128xf32>
    %11 = math.exp %10 : vector<2x128xf32>
    %cst_3 = arith.constant 1.000000e+00 : f32
    %12 = vector.broadcast %cst_3 : f32 to vector<2x128xf32>
    %13 = arith.addf %12, %11 : vector<2x128xf32>
    %14 = arith.divf %12, %13 : vector<2x128xf32>
    %15 = vector.extract_strided_slice %1 {offsets = [0, 256], sizes = [2, 128], strides = [1, 1]} : vector<2x512xf32> to vector<2x128xf32>
    %16 = math.tanh %15 : vector<2x128xf32>
    %17 = vector.extract_strided_slice %1 {offsets = [0, 384], sizes = [2, 128], strides = [1, 1]} : vector<2x512xf32> to vector<2x128xf32>
    %18 = arith.negf %17 : vector<2x128xf32>
    %19 = math.exp %18 : vector<2x128xf32>
    %cst_4 = arith.constant 1.000000e+00 : f32
    %20 = vector.broadcast %cst_4 : f32 to vector<2x128xf32>
    %21 = arith.addf %20, %19 : vector<2x128xf32>
    %22 = arith.divf %20, %21 : vector<2x128xf32>
    %23 = arith.mulf %14, %2 : vector<2x128xf32>
    %24 = arith.mulf %8, %16 : vector<2x128xf32>
    %25 = arith.addf %23, %24 : vector<2x128xf32>
    %26 = math.tanh %25 : vector<2x128xf32>
    %27 = arith.mulf %22, %26 : vector<2x128xf32>
    %28 = tpu.iota {dimensions = array<i32: 1>} : vector<2x128xi32>
    %c64_i32 = arith.constant 64 : i32
    %29 = vector.broadcast %c64_i32 : i32 to vector<2x128xi32>
    %30 = arith.cmpi slt, %28, %29 : vector<2x128xi32>
    %cst_5 = arith.constant 0.000000e+00 : f32
    %31 = vector.broadcast %cst_5 : f32 to vector<2x128xf32>
    %32 = arith.select %30, %27, %31 : vector<2x128xi1>, vector<2x128xf32>
    %cst_6 = arith.constant 0.000000e+00 : f32
    %33 = vector.broadcast %cst_6 : f32 to vector<2x128xf32>
    %34 = arith.select %30, %25, %33 : vector<2x128xi1>, vector<2x128xf32>
    %c1 = arith.constant 1 : index
    %c0_7 = arith.constant 0 : index
    %c0_8 = arith.constant 0 : index
    %35 = vector.load %arg0[%c1, %c0_7, %c0_8] : memref<8x2x512xf32, #tpu.memory_space<vmem>>, vector<1x2x512xf32>
    %36 = vector.shape_cast %35 : vector<1x2x512xf32> to vector<2x512xf32>
    %c0_9 = arith.constant 0 : index
    %c0_10 = arith.constant 0 : index
    %37 = vector.load %arg1[%c0_9, %c0_10] : memref<128x512xf32, #tpu.memory_space<vmem>>, vector<128x512xf32>
    %cst_11 = arith.constant dense<0.000000e+00> : vector<2x512xf32>
    %38 = tpu.matmul %32, %37, %cst_11 {dimension_numbers = #tpu.dot_dimension_numbers<[1], [0], [0], [1], [0, 0, 1, 1], [], []>} : vector<2x128xf32>, vector<128x512xf32>, vector<2x512xf32> -> vector<2x512xf32>
    %39 = arith.addf %36, %38 : vector<2x512xf32>
    %40 = vector.extract_strided_slice %39 {offsets = [0, 0], sizes = [2, 128], strides = [1, 1]} : vector<2x512xf32> to vector<2x128xf32>
    %41 = arith.negf %40 : vector<2x128xf32>
    %42 = math.exp %41 : vector<2x128xf32>
    %cst_12 = arith.constant 1.000000e+00 : f32
    %43 = vector.broadcast %cst_12 : f32 to vector<2x128xf32>
    %44 = arith.addf %43, %42 : vector<2x128xf32>
    %45 = arith.divf %43, %44 : vector<2x128xf32>
    %46 = vector.extract_strided_slice %39 {offsets = [0, 128], sizes = [2, 128], strides = [1, 1]} : vector<2x512xf32> to vector<2x128xf32>
    %47 = arith.negf %46 : vector<2x128xf32>
    %48 = math.exp %47 : vector<2x128xf32>
    %cst_13 = arith.constant 1.000000e+00 : f32
    %49 = vector.broadcast %cst_13 : f32 to vector<2x128xf32>
    %50 = arith.addf %49, %48 : vector<2x128xf32>
    %51 = arith.divf %49, %50 : vector<2x128xf32>
    %52 = vector.extract_strided_slice %39 {offsets = [0, 256], sizes = [2, 128], strides = [1, 1]} : vector<2x512xf32> to vector<2x128xf32>
    %53 = math.tanh %52 : vector<2x128xf32>
    %54 = vector.extract_strided_slice %39 {offsets = [0, 384], sizes = [2, 128], strides = [1, 1]} : vector<2x512xf32> to vector<2x128xf32>
    %55 = arith.negf %54 : vector<2x128xf32>
    %56 = math.exp %55 : vector<2x128xf32>
    %cst_14 = arith.constant 1.000000e+00 : f32
    %57 = vector.broadcast %cst_14 : f32 to vector<2x128xf32>
    %58 = arith.addf %57, %56 : vector<2x128xf32>
    %59 = arith.divf %57, %58 : vector<2x128xf32>
    %60 = arith.mulf %51, %34 : vector<2x128xf32>
    %61 = arith.mulf %45, %53 : vector<2x128xf32>
    %62 = arith.addf %60, %61 : vector<2x128xf32>
    %63 = math.tanh %62 : vector<2x128xf32>
    %64 = arith.mulf %59, %63 : vector<2x128xf32>
    %65 = vector.extract_strided_slice %64 {offsets = [0, 64], sizes = [2, 64], strides = [1, 1]} : vector<2x128xf32> to vector<2x64xf32>
    %c0_15 = arith.constant 0 : index
    %c0_16 = arith.constant 0 : index
    %c0_17 = arith.constant 0 : index
    %66 = vector.load %arg3[%c0_15, %c0_16, %c0_17] : memref<2x8x64xf32, #tpu.memory_space<vmem>>, vector<2x1x64xf32>
    %67 = vector.shape_cast %66 : vector<2x1x64xf32> to vector<2x64xf32>
    %68 = vector.shape_cast %65 : vector<2x64xf32> to vector<2x1x64xf32>
    tpu.vector_store %arg3[%c0_15, %c0_16, %c0_17], %68 {strides = array<i32>} : memref<2x8x64xf32, #tpu.memory_space<vmem>>, vector<2x1x64xf32>,
    %c2 = arith.constant 2 : index
    %c0_18 = arith.constant 0 : index
    %c0_19 = arith.constant 0 : index
    %69 = vector.load %arg0[%c2, %c0_18, %c0_19] : memref<8x2x512xf32, #tpu.memory_space<vmem>>, vector<1x2x512xf32>
    %70 = vector.shape_cast %69 : vector<1x2x512xf32> to vector<2x512xf32>
    %c0_20 = arith.constant 0 : index
    %c0_21 = arith.constant 0 : index
    %71 = vector.load %arg1[%c0_20, %c0_21] : memref<128x512xf32, #tpu.memory_space<vmem>>, vector<128x512xf32>
    %cst_22 = arith.constant dense<0.000000e+00> : vector<2x512xf32>
    %72 = tpu.matmul %64, %71, %cst_22 {dimension_numbers = #tpu.dot_dimension_numbers<[1], [0], [0], [1], [0, 0, 1, 1], [], []>} : vector<2x128xf32>, vector<128x512xf32>, vector<2x512xf32> -> vector<2x512xf32>
    %73 = arith.addf %70, %72 : vector<2x512xf32>
    %74 = vector.extract_strided_slice %73 {offsets = [0, 0], sizes = [2, 128], strides = [1, 1]} : vector<2x512xf32> to vector<2x128xf32>
    %75 = arith.negf %74 : vector<2x128xf32>
    %76 = math.exp %75 : vector<2x128xf32>
    %cst_23 = arith.constant 1.000000e+00 : f32
    %77 = vector.broadcast %cst_23 : f32 to vector<2x128xf32>
    %78 = arith.addf %77, %76 : vector<2x128xf32>
    %79 = arith.divf %77, %78 : vector<2x128xf32>
    %80 = vector.extract_strided_slice %73 {offsets = [0, 128], sizes = [2, 128], strides = [1, 1]} : vector<2x512xf32> to vector<2x128xf32>
    %81 = arith.negf %80 : vector<2x128xf32>
    %82 = math.exp %81 : vector<2x128xf32>
    %cst_24 = arith.constant 1.000000e+00 : f32
    %83 = vector.broadcast %cst_24 : f32 to vector<2x128xf32>
    %84 = arith.addf %83, %82 : vector<2x128xf32>
    %85 = arith.divf %83, %84 : vector<2x128xf32>
    %86 = vector.extract_strided_slice %73 {offsets = [0, 256], sizes = [2, 128], strides = [1, 1]} : vector<2x512xf32> to vector<2x128xf32>
    %87 = math.tanh %86 : vector<2x128xf32>
    %88 = vector.extract_strided_slice %73 {offsets = [0, 384], sizes = [2, 128], strides = [1, 1]} : vector<2x512xf32> to vector<2x128xf32>
    %89 = arith.negf %88 : vector<2x128xf32>
    %90 = math.exp %89 : vector<2x128xf32>
    %cst_25 = arith.constant 1.000000e+00 : f32
    %91 = vector.broadcast %cst_25 : f32 to vector<2x128xf32>
    %92 = arith.addf %91, %90 : vector<2x128xf32>
    %93 = arith.divf %91, %92 : vector<2x128xf32>
    %94 = arith.mulf %85, %62 : vector<2x128xf32>
    %95 = arith.mulf %79, %87 : vector<2x128xf32>
    %96 = arith.addf %94, %95 : vector<2x128xf32>
    %97 = math.tanh %96 : vector<2x128xf32>
    %98 = arith.mulf %93, %97 : vector<2x128xf32>
    %99 = vector.extract_strided_slice %98 {offsets = [0, 64], sizes = [2, 64], strides = [1, 1]} : vector<2x128xf32> to vector<2x64xf32>
    %c0_26 = arith.constant 0 : index
    %c1_27 = arith.constant 1 : index
    %c0_28 = arith.constant 0 : index
    %100 = vector.load %arg3[%c0_26, %c1_27, %c0_28] : memref<2x8x64xf32, #tpu.memory_space<vmem>>, vector<2x1x64xf32>
    %101 = vector.shape_cast %100 : vector<2x1x64xf32> to vector<2x64xf32>
    %102 = vector.shape_cast %99 : vector<2x64xf32> to vector<2x1x64xf32>
    tpu.vector_store %arg3[%c0_26, %c1_27, %c0_28], %102 {strides = array<i32>} : memref<2x8x64xf32, #tpu.memory_space<vmem>>, vector<2x1x64xf32>,
    %c3 = arith.constant 3 : index
    %c0_29 = arith.constant 0 : index
    %c0_30 = arith.constant 0 : index
    %103 = vector.load %arg0[%c3, %c0_29, %c0_30] : memref<8x2x512xf32, #tpu.memory_space<vmem>>, vector<1x2x512xf32>
    %104 = vector.shape_cast %103 : vector<1x2x512xf32> to vector<2x512xf32>
    %c0_31 = arith.constant 0 : index
    %c0_32 = arith.constant 0 : index
    %105 = vector.load %arg1[%c0_31, %c0_32] : memref<128x512xf32, #tpu.memory_space<vmem>>, vector<128x512xf32>
    %cst_33 = arith.constant dense<0.000000e+00> : vector<2x512xf32>
    %106 = tpu.matmul %98, %105, %cst_33 {dimension_numbers = #tpu.dot_dimension_numbers<[1], [0], [0], [1], [0, 0, 1, 1], [], []>} : vector<2x128xf32>, vector<128x512xf32>, vector<2x512xf32> -> vector<2x512xf32>
    %107 = arith.addf %104, %106 : vector<2x512xf32>
    %108 = vector.extract_strided_slice %107 {offsets = [0, 0], sizes = [2, 128], strides = [1, 1]} : vector<2x512xf32> to vector<2x128xf32>
    %109 = arith.negf %108 : vector<2x128xf32>
    %110 = math.exp %109 : vector<2x128xf32>
    %cst_34 = arith.constant 1.000000e+00 : f32
    %111 = vector.broadcast %cst_34 : f32 to vector<2x128xf32>
    %112 = arith.addf %111, %110 : vector<2x128xf32>
    %113 = arith.divf %111, %112 : vector<2x128xf32>
    %114 = vector.extract_strided_slice %107 {offsets = [0, 128], sizes = [2, 128], strides = [1, 1]} : vector<2x512xf32> to vector<2x128xf32>
    %115 = arith.negf %114 : vector<2x128xf32>
    %116 = math.exp %115 : vector<2x128xf32>
    %cst_35 = arith.constant 1.000000e+00 : f32
    %117 = vector.broadcast %cst_35 : f32 to vector<2x128xf32>
    %118 = arith.addf %117, %116 : vector<2x128xf32>
    %119 = arith.divf %117, %118 : vector<2x128xf32>
    %120 = vector.extract_strided_slice %107 {offsets = [0, 256], sizes = [2, 128], strides = [1, 1]} : vector<2x512xf32> to vector<2x128xf32>
    %121 = math.tanh %120 : vector<2x128xf32>
    %122 = vector.extract_strided_slice %107 {offsets = [0, 384], sizes = [2, 128], strides = [1, 1]} : vector<2x512xf32> to vector<2x128xf32>
    %123 = arith.negf %122 : vector<2x128xf32>
    %124 = math.exp %123 : vector<2x128xf32>
    %cst_36 = arith.constant 1.000000e+00 : f32
    %125 = vector.broadcast %cst_36 : f32 to vector<2x128xf32>
    %126 = arith.addf %125, %124 : vector<2x128xf32>
    %127 = arith.divf %125, %126 : vector<2x128xf32>
    %128 = arith.mulf %119, %96 : vector<2x128xf32>
    %129 = arith.mulf %113, %121 : vector<2x128xf32>
    %130 = arith.addf %128, %129 : vector<2x128xf32>
    %131 = math.tanh %130 : vector<2x128xf32>
    %132 = arith.mulf %127, %131 : vector<2x128xf32>
    %133 = vector.extract_strided_slice %132 {offsets = [0, 64], sizes = [2, 64], strides = [1, 1]} : vector<2x128xf32> to vector<2x64xf32>
    %c0_37 = arith.constant 0 : index
    %c2_38 = arith.constant 2 : index
    %c0_39 = arith.constant 0 : index
    %134 = vector.load %arg3[%c0_37, %c2_38, %c0_39] : memref<2x8x64xf32, #tpu.memory_space<vmem>>, vector<2x1x64xf32>
    %135 = vector.shape_cast %134 : vector<2x1x64xf32> to vector<2x64xf32>
    %136 = vector.shape_cast %133 : vector<2x64xf32> to vector<2x1x64xf32>
    tpu.vector_store %arg3[%c0_37, %c2_38, %c0_39], %136 {strides = array<i32>} : memref<2x8x64xf32, #tpu.memory_space<vmem>>, vector<2x1x64xf32>,
    %c4 = arith.constant 4 : index
    %c0_40 = arith.constant 0 : index
    %c0_41 = arith.constant 0 : index
    %137 = vector.load %arg0[%c4, %c0_40, %c0_41] : memref<8x2x512xf32, #tpu.memory_space<vmem>>, vector<1x2x512xf32>
    %138 = vector.shape_cast %137 : vector<1x2x512xf32> to vector<2x512xf32>
    %c0_42 = arith.constant 0 : index
    %c0_43 = arith.constant 0 : index
    %139 = vector.load %arg1[%c0_42, %c0_43] : memref<128x512xf32, #tpu.memory_space<vmem>>, vector<128x512xf32>
    %cst_44 = arith.constant dense<0.000000e+00> : vector<2x512xf32>
    %140 = tpu.matmul %132, %139, %cst_44 {dimension_numbers = #tpu.dot_dimension_numbers<[1], [0], [0], [1], [0, 0, 1, 1], [], []>} : vector<2x128xf32>, vector<128x512xf32>, vector<2x512xf32> -> vector<2x512xf32>
    %141 = arith.addf %138, %140 : vector<2x512xf32>
    %142 = vector.extract_strided_slice %141 {offsets = [0, 0], sizes = [2, 128], strides = [1, 1]} : vector<2x512xf32> to vector<2x128xf32>
    %143 = arith.negf %142 : vector<2x128xf32>
    %144 = math.exp %143 : vector<2x128xf32>
    %cst_45 = arith.constant 1.000000e+00 : f32
    %145 = vector.broadcast %cst_45 : f32 to vector<2x128xf32>
    %146 = arith.addf %145, %144 : vector<2x128xf32>
    %147 = arith.divf %145, %146 : vector<2x128xf32>
    %148 = vector.extract_strided_slice %141 {offsets = [0, 128], sizes = [2, 128], strides = [1, 1]} : vector<2x512xf32> to vector<2x128xf32>
    %149 = arith.negf %148 : vector<2x128xf32>
    %150 = math.exp %149 : vector<2x128xf32>
    %cst_46 = arith.constant 1.000000e+00 : f32
    %151 = vector.broadcast %cst_46 : f32 to vector<2x128xf32>
    %152 = arith.addf %151, %150 : vector<2x128xf32>
    %153 = arith.divf %151, %152 : vector<2x128xf32>
    %154 = vector.extract_strided_slice %141 {offsets = [0, 256], sizes = [2, 128], strides = [1, 1]} : vector<2x512xf32> to vector<2x128xf32>
    %155 = math.tanh %154 : vector<2x128xf32>
    %156 = vector.extract_strided_slice %141 {offsets = [0, 384], sizes = [2, 128], strides = [1, 1]} : vector<2x512xf32> to vector<2x128xf32>
    %157 = arith.negf %156 : vector<2x128xf32>
    %158 = math.exp %157 : vector<2x128xf32>
    %cst_47 = arith.constant 1.000000e+00 : f32
    %159 = vector.broadcast %cst_47 : f32 to vector<2x128xf32>
    %160 = arith.addf %159, %158 : vector<2x128xf32>
    %161 = arith.divf %159, %160 : vector<2x128xf32>
    %162 = arith.mulf %153, %130 : vector<2x128xf32>
    %163 = arith.mulf %147, %155 : vector<2x128xf32>
    %164 = arith.addf %162, %163 : vector<2x128xf32>
    %165 = math.tanh %164 : vector<2x128xf32>
    %166 = arith.mulf %161, %165 : vector<2x128xf32>
    %167 = vector.extract_strided_slice %166 {offsets = [0, 64], sizes = [2, 64], strides = [1, 1]} : vector<2x128xf32> to vector<2x64xf32>
    %c0_48 = arith.constant 0 : index
    %c3_49 = arith.constant 3 : index
    %c0_50 = arith.constant 0 : index
    %168 = vector.load %arg3[%c0_48, %c3_49, %c0_50] : memref<2x8x64xf32, #tpu.memory_space<vmem>>, vector<2x1x64xf32>
    %169 = vector.shape_cast %168 : vector<2x1x64xf32> to vector<2x64xf32>
    %170 = vector.shape_cast %167 : vector<2x64xf32> to vector<2x1x64xf32>
    tpu.vector_store %arg3[%c0_48, %c3_49, %c0_50], %170 {strides = array<i32>} : memref<2x8x64xf32, #tpu.memory_space<vmem>>, vector<2x1x64xf32>,
    %c5 = arith.constant 5 : index
    %c0_51 = arith.constant 0 : index
    %c0_52 = arith.constant 0 : index
    %171 = vector.load %arg0[%c5, %c0_51, %c0_52] : memref<8x2x512xf32, #tpu.memory_space<vmem>>, vector<1x2x512xf32>
    %172 = vector.shape_cast %171 : vector<1x2x512xf32> to vector<2x512xf32>
    %c0_53 = arith.constant 0 : index
    %c0_54 = arith.constant 0 : index
    %173 = vector.load %arg1[%c0_53, %c0_54] : memref<128x512xf32, #tpu.memory_space<vmem>>, vector<128x512xf32>
    %cst_55 = arith.constant dense<0.000000e+00> : vector<2x512xf32>
    %174 = tpu.matmul %166, %173, %cst_55 {dimension_numbers = #tpu.dot_dimension_numbers<[1], [0], [0], [1], [0, 0, 1, 1], [], []>} : vector<2x128xf32>, vector<128x512xf32>, vector<2x512xf32> -> vector<2x512xf32>
    %175 = arith.addf %172, %174 : vector<2x512xf32>
    %176 = vector.extract_strided_slice %175 {offsets = [0, 0], sizes = [2, 128], strides = [1, 1]} : vector<2x512xf32> to vector<2x128xf32>
    %177 = arith.negf %176 : vector<2x128xf32>
    %178 = math.exp %177 : vector<2x128xf32>
    %cst_56 = arith.constant 1.000000e+00 : f32
    %179 = vector.broadcast %cst_56 : f32 to vector<2x128xf32>
    %180 = arith.addf %179, %178 : vector<2x128xf32>
    %181 = arith.divf %179, %180 : vector<2x128xf32>
    %182 = vector.extract_strided_slice %175 {offsets = [0, 128], sizes = [2, 128], strides = [1, 1]} : vector<2x512xf32> to vector<2x128xf32>
    %183 = arith.negf %182 : vector<2x128xf32>
    %184 = math.exp %183 : vector<2x128xf32>
    %cst_57 = arith.constant 1.000000e+00 : f32
    %185 = vector.broadcast %cst_57 : f32 to vector<2x128xf32>
    %186 = arith.addf %185, %184 : vector<2x128xf32>
    %187 = arith.divf %185, %186 : vector<2x128xf32>
    %188 = vector.extract_strided_slice %175 {offsets = [0, 256], sizes = [2, 128], strides = [1, 1]} : vector<2x512xf32> to vector<2x128xf32>
    %189 = math.tanh %188 : vector<2x128xf32>
    %190 = vector.extract_strided_slice %175 {offsets = [0, 384], sizes = [2, 128], strides = [1, 1]} : vector<2x512xf32> to vector<2x128xf32>
    %191 = arith.negf %190 : vector<2x128xf32>
    %192 = math.exp %191 : vector<2x128xf32>
    %cst_58 = arith.constant 1.000000e+00 : f32
    %193 = vector.broadcast %cst_58 : f32 to vector<2x128xf32>
    %194 = arith.addf %193, %192 : vector<2x128xf32>
    %195 = arith.divf %193, %194 : vector<2x128xf32>
    %196 = arith.mulf %187, %164 : vector<2x128xf32>
    %197 = arith.mulf %181, %189 : vector<2x128xf32>
    %198 = arith.addf %196, %197 : vector<2x128xf32>
    %199 = math.tanh %198 : vector<2x128xf32>
    %200 = arith.mulf %195, %199 : vector<2x128xf32>
    %201 = vector.extract_strided_slice %200 {offsets = [0, 64], sizes = [2, 64], strides = [1, 1]} : vector<2x128xf32> to vector<2x64xf32>
    %c0_59 = arith.constant 0 : index
    %c4_60 = arith.constant 4 : index
    %c0_61 = arith.constant 0 : index
    %202 = vector.load %arg3[%c0_59, %c4_60, %c0_61] : memref<2x8x64xf32, #tpu.memory_space<vmem>>, vector<2x1x64xf32>
    %203 = vector.shape_cast %202 : vector<2x1x64xf32> to vector<2x64xf32>
    %204 = vector.shape_cast %201 : vector<2x64xf32> to vector<2x1x64xf32>
    tpu.vector_store %arg3[%c0_59, %c4_60, %c0_61], %204 {strides = array<i32>} : memref<2x8x64xf32, #tpu.memory_space<vmem>>, vector<2x1x64xf32>,
    %c6 = arith.constant 6 : index
    %c0_62 = arith.constant 0 : index
    %c0_63 = arith.constant 0 : index
    %205 = vector.load %arg0[%c6, %c0_62, %c0_63] : memref<8x2x512xf32, #tpu.memory_space<vmem>>, vector<1x2x512xf32>
    %206 = vector.shape_cast %205 : vector<1x2x512xf32> to vector<2x512xf32>
    %c0_64 = arith.constant 0 : index
    %c0_65 = arith.constant 0 : index
    %207 = vector.load %arg1[%c0_64, %c0_65] : memref<128x512xf32, #tpu.memory_space<vmem>>, vector<128x512xf32>
    %cst_66 = arith.constant dense<0.000000e+00> : vector<2x512xf32>
    %208 = tpu.matmul %200, %207, %cst_66 {dimension_numbers = #tpu.dot_dimension_numbers<[1], [0], [0], [1], [0, 0, 1, 1], [], []>} : vector<2x128xf32>, vector<128x512xf32>, vector<2x512xf32> -> vector<2x512xf32>
    %209 = arith.addf %206, %208 : vector<2x512xf32>
    %210 = vector.extract_strided_slice %209 {offsets = [0, 0], sizes = [2, 128], strides = [1, 1]} : vector<2x512xf32> to vector<2x128xf32>
    %211 = arith.negf %210 : vector<2x128xf32>
    %212 = math.exp %211 : vector<2x128xf32>
    %cst_67 = arith.constant 1.000000e+00 : f32
    %213 = vector.broadcast %cst_67 : f32 to vector<2x128xf32>
    %214 = arith.addf %213, %212 : vector<2x128xf32>
    %215 = arith.divf %213, %214 : vector<2x128xf32>
    %216 = vector.extract_strided_slice %209 {offsets = [0, 128], sizes = [2, 128], strides = [1, 1]} : vector<2x512xf32> to vector<2x128xf32>
    %217 = arith.negf %216 : vector<2x128xf32>
    %218 = math.exp %217 : vector<2x128xf32>
    %cst_68 = arith.constant 1.000000e+00 : f32
    %219 = vector.broadcast %cst_68 : f32 to vector<2x128xf32>
    %220 = arith.addf %219, %218 : vector<2x128xf32>
    %221 = arith.divf %219, %220 : vector<2x128xf32>
    %222 = vector.extract_strided_slice %209 {offsets = [0, 256], sizes = [2, 128], strides = [1, 1]} : vector<2x512xf32> to vector<2x128xf32>
    %223 = math.tanh %222 : vector<2x128xf32>
    %224 = vector.extract_strided_slice %209 {offsets = [0, 384], sizes = [2, 128], strides = [1, 1]} : vector<2x512xf32> to vector<2x128xf32>
    %225 = arith.negf %224 : vector<2x128xf32>
    %226 = math.exp %225 : vector<2x128xf32>
    %cst_69 = arith.constant 1.000000e+00 : f32
    %227 = vector.broadcast %cst_69 : f32 to vector<2x128xf32>
    %228 = arith.addf %227, %226 : vector<2x128xf32>
    %229 = arith.divf %227, %228 : vector<2x128xf32>
    %230 = arith.mulf %221, %198 : vector<2x128xf32>
    %231 = arith.mulf %215, %223 : vector<2x128xf32>
    %232 = arith.addf %230, %231 : vector<2x128xf32>
    %233 = math.tanh %232 : vector<2x128xf32>
    %234 = arith.mulf %229, %233 : vector<2x128xf32>
    %235 = vector.extract_strided_slice %234 {offsets = [0, 64], sizes = [2, 64], strides = [1, 1]} : vector<2x128xf32> to vector<2x64xf32>
    %c0_70 = arith.constant 0 : index
    %c5_71 = arith.constant 5 : index
    %c0_72 = arith.constant 0 : index
    %236 = vector.load %arg3[%c0_70, %c5_71, %c0_72] : memref<2x8x64xf32, #tpu.memory_space<vmem>>, vector<2x1x64xf32>
    %237 = vector.shape_cast %236 : vector<2x1x64xf32> to vector<2x64xf32>
    %238 = vector.shape_cast %235 : vector<2x64xf32> to vector<2x1x64xf32>
    tpu.vector_store %arg3[%c0_70, %c5_71, %c0_72], %238 {strides = array<i32>} : memref<2x8x64xf32, #tpu.memory_space<vmem>>, vector<2x1x64xf32>,
    %c7 = arith.constant 7 : index
    %c0_73 = arith.constant 0 : index
    %c0_74 = arith.constant 0 : index
    %239 = vector.load %arg0[%c7, %c0_73, %c0_74] : memref<8x2x512xf32, #tpu.memory_space<vmem>>, vector<1x2x512xf32>
    %240 = vector.shape_cast %239 : vector<1x2x512xf32> to vector<2x512xf32>
    %c0_75 = arith.constant 0 : index
    %c0_76 = arith.constant 0 : index
    %241 = vector.load %arg1[%c0_75, %c0_76] : memref<128x512xf32, #tpu.memory_space<vmem>>, vector<128x512xf32>
    %cst_77 = arith.constant dense<0.000000e+00> : vector<2x512xf32>
    %242 = tpu.matmul %234, %241, %cst_77 {dimension_numbers = #tpu.dot_dimension_numbers<[1], [0], [0], [1], [0, 0, 1, 1], [], []>} : vector<2x128xf32>, vector<128x512xf32>, vector<2x512xf32> -> vector<2x512xf32>
    %243 = arith.addf %240, %242 : vector<2x512xf32>
    %244 = vector.extract_strided_slice %243 {offsets = [0, 0], sizes = [2, 128], strides = [1, 1]} : vector<2x512xf32> to vector<2x128xf32>
    %245 = arith.negf %244 : vector<2x128xf32>
    %246 = math.exp %245 : vector<2x128xf32>
    %cst_78 = arith.constant 1.000000e+00 : f32
    %247 = vector.broadcast %cst_78 : f32 to vector<2x128xf32>
    %248 = arith.addf %247, %246 : vector<2x128xf32>
    %249 = arith.divf %247, %248 : vector<2x128xf32>
    %250 = vector.extract_strided_slice %243 {offsets = [0, 128], sizes = [2, 128], strides = [1, 1]} : vector<2x512xf32> to vector<2x128xf32>
    %251 = arith.negf %250 : vector<2x128xf32>
    %252 = math.exp %251 : vector<2x128xf32>
    %cst_79 = arith.constant 1.000000e+00 : f32
    %253 = vector.broadcast %cst_79 : f32 to vector<2x128xf32>
    %254 = arith.addf %253, %252 : vector<2x128xf32>
    %255 = arith.divf %253, %254 : vector<2x128xf32>
    %256 = vector.extract_strided_slice %243 {offsets = [0, 256], sizes = [2, 128], strides = [1, 1]} : vector<2x512xf32> to vector<2x128xf32>
    %257 = math.tanh %256 : vector<2x128xf32>
    %258 = vector.extract_strided_slice %243 {offsets = [0, 384], sizes = [2, 128], strides = [1, 1]} : vector<2x512xf32> to vector<2x128xf32>
    %259 = arith.negf %258 : vector<2x128xf32>
    %260 = math.exp %259 : vector<2x128xf32>
    %cst_80 = arith.constant 1.000000e+00 : f32
    %261 = vector.broadcast %cst_80 : f32 to vector<2x128xf32>
    %262 = arith.addf %261, %260 : vector<2x128xf32>
    %263 = arith.divf %261, %262 : vector<2x128xf32>
    %264 = arith.mulf %255, %232 : vector<2x128xf32>
    %265 = arith.mulf %249, %257 : vector<2x128xf32>
    %266 = arith.addf %264, %265 : vector<2x128xf32>
    %267 = math.tanh %266 : vector<2x128xf32>
    %268 = arith.mulf %263, %267 : vector<2x128xf32>
    %269 = vector.extract_strided_slice %268 {offsets = [0, 64], sizes = [2, 64], strides = [1, 1]} : vector<2x128xf32> to vector<2x64xf32>
    %c0_81 = arith.constant 0 : index
    %c6_82 = arith.constant 6 : index
    %c0_83 = arith.constant 0 : index
    %270 = vector.load %arg3[%c0_81, %c6_82, %c0_83] : memref<2x8x64xf32, #tpu.memory_space<vmem>>, vector<2x1x64xf32>
    %271 = vector.shape_cast %270 : vector<2x1x64xf32> to vector<2x64xf32>
    %272 = vector.shape_cast %269 : vector<2x64xf32> to vector<2x1x64xf32>
    tpu.vector_store %arg3[%c0_81, %c6_82, %c0_83], %272 {strides = array<i32>} : memref<2x8x64xf32, #tpu.memory_space<vmem>>, vector<2x1x64xf32>,
    %c0_84 = arith.constant 0 : index
    %c0_85 = arith.constant 0 : index
    %273 = vector.load %arg2[%c0_84, %c0_85] : memref<1x512xf32, #tpu.memory_space<vmem>>, vector<1x512xf32>
    %c0_86 = arith.constant 0 : index
    %c0_87 = arith.constant 0 : index
    %274 = vector.load %arg1[%c0_86, %c0_87] : memref<128x512xf32, #tpu.memory_space<vmem>>, vector<128x512xf32>
    %cst_88 = arith.constant dense<0.000000e+00> : vector<2x512xf32>
    %275 = tpu.matmul %268, %274, %cst_88 {dimension_numbers = #tpu.dot_dimension_numbers<[1], [0], [0], [1], [0, 0, 1, 1], [], []>} : vector<2x128xf32>, vector<128x512xf32>, vector<2x512xf32> -> vector<2x512xf32>
    %276 = vector.broadcast %273 : vector<1x512xf32> to vector<2x512xf32>
    %277 = arith.addf %276, %275 : vector<2x512xf32>
    %278 = vector.extract_strided_slice %277 {offsets = [0, 0], sizes = [2, 128], strides = [1, 1]} : vector<2x512xf32> to vector<2x128xf32>
    %279 = arith.negf %278 : vector<2x128xf32>
    %280 = math.exp %279 : vector<2x128xf32>
    %cst_89 = arith.constant 1.000000e+00 : f32
    %281 = vector.broadcast %cst_89 : f32 to vector<2x128xf32>
    %282 = arith.addf %281, %280 : vector<2x128xf32>
    %283 = arith.divf %281, %282 : vector<2x128xf32>
    %284 = vector.extract_strided_slice %277 {offsets = [0, 128], sizes = [2, 128], strides = [1, 1]} : vector<2x512xf32> to vector<2x128xf32>
    %285 = arith.negf %284 : vector<2x128xf32>
    %286 = math.exp %285 : vector<2x128xf32>
    %cst_90 = arith.constant 1.000000e+00 : f32
    %287 = vector.broadcast %cst_90 : f32 to vector<2x128xf32>
    %288 = arith.addf %287, %286 : vector<2x128xf32>
    %289 = arith.divf %287, %288 : vector<2x128xf32>
    %290 = vector.extract_strided_slice %277 {offsets = [0, 256], sizes = [2, 128], strides = [1, 1]} : vector<2x512xf32> to vector<2x128xf32>
    %291 = math.tanh %290 : vector<2x128xf32>
    %292 = vector.extract_strided_slice %277 {offsets = [0, 384], sizes = [2, 128], strides = [1, 1]} : vector<2x512xf32> to vector<2x128xf32>
    %293 = arith.negf %292 : vector<2x128xf32>
    %294 = math.exp %293 : vector<2x128xf32>
    %cst_91 = arith.constant 1.000000e+00 : f32
    %295 = vector.broadcast %cst_91 : f32 to vector<2x128xf32>
    %296 = arith.addf %295, %294 : vector<2x128xf32>
    %297 = arith.divf %295, %296 : vector<2x128xf32>
    %298 = arith.mulf %289, %266 : vector<2x128xf32>
    %299 = arith.mulf %283, %291 : vector<2x128xf32>
    %300 = arith.addf %298, %299 : vector<2x128xf32>
    %301 = math.tanh %300 : vector<2x128xf32>
    %302 = arith.mulf %297, %301 : vector<2x128xf32>
    %303 = vector.extract_strided_slice %302 {offsets = [0, 64], sizes = [2, 64], strides = [1, 1]} : vector<2x128xf32> to vector<2x64xf32>
    %c0_92 = arith.constant 0 : index
    %c7_93 = arith.constant 7 : index
    %c0_94 = arith.constant 0 : index
    %304 = vector.load %arg3[%c0_92, %c7_93, %c0_94] : memref<2x8x64xf32, #tpu.memory_space<vmem>>, vector<2x1x64xf32>
    %305 = vector.shape_cast %304 : vector<2x1x64xf32> to vector<2x64xf32>
    %306 = vector.shape_cast %303 : vector<2x64xf32> to vector<2x1x64xf32>
    tpu.vector_store %arg3[%c0_92, %c7_93, %c0_94], %306 {strides = array<i32>} : memref<2x8x64xf32, #tpu.memory_space<vmem>>, vector<2x1x64xf32>,
    return
  }
}

</mosaic_0001>

<llo_original>
// kernel: rnn_forward.1
$region0: #{rnn_forward.1}
  #allocation0 [shape = 'u32[]', space=smem, size = 0x4, offset = 0x4, fixed_abs, tag = 'smem constant byte address 0x4 - core index']
  #allocation1 [shape = 'u32[144,128]{1,0:T(1,128)}', space=vmem, size = 0x12000, scoped, tag = 'internal scratch']
  %s0 = inlined_call_operand.vmem [shape: f32[8,2,512], index: 0, kind: input, shape index: {}]
  %s1 = inlined_call_operand.hbm [shape: f32[128,512], index: 1, kind: input, shape index: {}]
  %s2 = inlined_call_operand.vmem [shape: f32[1,512], index: 2, kind: input, shape index: {}]
  %s3 = inlined_call_operand.hbm [shape: f32[2,8,64], index: 3, kind: output, shape index: {}]
  %s4 = sld [smem:[#allocation0]]
  $region26: #{rnn_forward.1} parent=0
    _
  %s6 = ssub.s32 1, %s4
  %s7 = scalar_select 0, %s6, %s4
  $region1: #{rnn_forward.1} parent=0
    #allocation2 [shape = 'u8[262144]{0}', space=vmem, size = 0x40000, scoped, tag = 'input window, operand 1, single buffered']
    #allocation3 [shape = 's32[1]{0}', space=sflag, size = 0x4, scoped, tag = 'scoped memory for rnn_forward.1']
    #allocation4 [shape = 's32[1]{0}', space=sflag, size = 0x4, scoped, tag = 'scoped memory for rnn_forward.1']
    #allocation5 [shape = 'u8[8192]{0}', space=vmem, size = 0x2000, scoped, tag = 'output window, operand 0, single buffered']
    %8 = vsyncpa [#allocation3], 0
    %9 = vsyncpa [#allocation4], 0
    // Predicated region
    $region2: #{rnn_forward.1} parent=1 // pred_check
      _
    $region3: #{rnn_forward.1} parent=1 // pred_check_branch
      %11 = sbr.rel (0) target = $region5
    $region4: #{rnn_forward.1} parent=1 // pred_region
      _
    $region5: #{rnn_forward.1} parent=1 // pred_fallthru
      _
    // Predicated region
    $region6: #{rnn_forward.1} parent=1 // pred_check
      _
    $region7: #{rnn_forward.1} parent=1 // pred_check_branch
      %13 = sbr.rel (0) target = $region9
    $region8: #{rnn_forward.1} parent=1 // pred_region
      %s15 = ssub.s32 8192, 8192
      %16 = vsyncadd [#allocation3], %s15
      %s17 = sshll.u32 [#allocation2], 4
      %s18 = int_to_ptr.vmem [resolvable:$true] %s17
      %23 = dma.hbm_to_vmem [thread:$0]  %s1, 8192, %s18, [#allocation3], 512, 512, 32
    $region9: #{rnn_forward.1} parent=1 // pred_fallthru
      _
    // Predicated region
    $region10: #{rnn_forward.1} parent=1 // pred_check
      _
    $region11: #{rnn_forward.1} parent=1 // pred_check_branch
      %25 = sbr.rel (0) target = $region13
    $region12: #{rnn_forward.1} parent=1 // pred_region
      _
    $region13: #{rnn_forward.1} parent=1 // pred_fallthru
      _
    // Predicated region
    $region14: #{rnn_forward.1} parent=1 // pred_check
      _
    $region15: #{rnn_forward.1} parent=1 // pred_check_branch
      %27 = sbr.rel (0) target = $region17
    $region16: #{rnn_forward.1} parent=1 // pred_region
      %28 = dma.done [#allocation3], 8192
    $region17: #{rnn_forward.1} parent=1 // pred_fallthru
      _
    %v29 = vld [vmem:[%s0] sm:$0xff]
    %v30 = vxor.u32 %v29, 2147483648
    %v31 = vmul.f32 %v30, 1.442695
    %v32 = vpow.pop %v31
    %v33 = vadd.f32 %v32, 1.0
    %v34 = vrcp.pop %v33
    %v35 = vmul.f32 1.0, %v34
    %v37 = vrot.slane %v29, 2
    %v39 = vxor.u32 %v37, 2147483648
    %v40 = vmul.f32 %v39, 1.442695
    %v41 = vpow.pop %v40
    %v42 = vadd.f32 %v41, 1.0
    %v43 = vrcp.pop %v42
    %v44 = vmul.f32 1.0, %v43
    %v45 = vrot.slane %v29, 4
    %v47 = vtanh.pop %v45
    %v48 = vrot.slane %v29, 6
    %v50 = vxor.u32 %v48, 2147483648
    %v51 = vmul.f32 %v50, 1.442695
    %v52 = vpow.pop %v51
    %v53 = vadd.f32 %v52, 1.0
    %v54 = vrcp.pop %v53
    %v55 = vmul.f32 1.0, %v54
    %v56 = vmul.f32 %v44, 0.0
    %v57 = vmul.f32 %v35, %v47
    %v58 = vadd.f32 %v56, %v57
    %v59 = vtanh.pop %v58
    %v60 = vmul.f32 %v55, %v59
    %v61 = vlaneseq
    %v62 = vand.u32 %v61, 127
    %vm63 = vcmp.lt.s32.totalorder %v62, 64
    %v64 = vsel %vm63, %v60, 0.0
    %v65 = vsel %vm63, %v58, 0.0
    %s66 = scalar_lea.vmem %s0, 8
    %v67 = vld [vmem:[%s66] sm:$0xff]
    %v68 = vld [vmem:[#allocation2] sm:$0xff]
    %v69 = vld [vmem:[#allocation2 + $0x8] sm:$0xff]
    %v70 = vld [vmem:[#allocation2 + $0x10] sm:$0xff]
    %v71 = vld [vmem:[#allocation2 + $0x18] sm:$0xff]
    %v72 = vld [vmem:[#allocation2 + $0x20] sm:$0xff]
    %v73 = vld [vmem:[#allocation2 + $0x28] sm:$0xff]
    %v74 = vld [vmem:[#allocation2 + $0x30] sm:$0xff]
    %v75 = vld [vmem:[#allocation2 + $0x38] sm:$0xff]
    %v76 = vld [vmem:[#allocation2 + $0x40] sm:$0xff]
    %v77 = vld [vmem:[#allocation2 + $0x48] sm:$0xff]
    %v78 = vld [vmem:[#allocation2 + $0x50] sm:$0xff]
    %v79 = vld [vmem:[#allocation2 + $0x58] sm:$0xff]
    %v80 = vld [vmem:[#allocation2 + $0x60] sm:$0xff]
    %v81 = vld [vmem:[#allocation2 + $0x68] sm:$0xff]
    %v82 = vld [vmem:[#allocation2 + $0x70] sm:$0xff]
    %v83 = vld [vmem:[#allocation2 + $0x78] sm:$0xff]
    %v84 = vld [vmem:[#allocation2 + $0x80] sm:$0xff]
    %v85 = vld [vmem:[#allocation2 + $0x88] sm:$0xff]
    %v86 = vld [vmem:[#allocation2 + $0x90] sm:$0xff]
    %v87 = vld [vmem:[#allocation2 + $0x98] sm:$0xff]
    %v88 = vld [vmem:[#allocation2 + $0xa0] sm:$0xff]
    %v89 = vld [vmem:[#allocation2 + $0xa8] sm:$0xff]
    %v90 = vld [vmem:[#allocation2 + $0xb0] sm:$0xff]
    %v91 = vld [vmem:[#allocation2 + $0xb8] sm:$0xff]
    %v92 = vld [vmem:[#allocation2 + $0xc0] sm:$0xff]
    %v93 = vld [vmem:[#allocation2 + $0xc8] sm:$0xff]
    %v94 = vld [vmem:[#allocation2 + $0xd0] sm:$0xff]
    %v95 = vld [vmem:[#allocation2 + $0xd8] sm:$0xff]
    %v96 = vld [vmem:[#allocation2 + $0xe0] sm:$0xff]
    %v97 = vld [vmem:[#allocation2 + $0xe8] sm:$0xff]
    %v98 = vld [vmem:[#allocation2 + $0xf0] sm:$0xff]
    %v99 = vld [vmem:[#allocation2 + $0xf8] sm:$0xff]
    %v100 = vld [vmem:[#allocation2 + $0x100] sm:$0xff]
    %v101 = vld [vmem:[#allocation2 + $0x108] sm:$0xff]
    %v102 = vld [vmem:[#allocation2 + $0x110] sm:$0xff]
    %v103 = vld [vmem:[#allocation2 + $0x118] sm:$0xff]
    %v104 = vld [vmem:[#allocation2 + $0x120] sm:$0xff]
    %v105 = vld [vmem:[#allocation2 + $0x128] sm:$0xff]
    %v106 = vld [vmem:[#allocation2 + $0x130] sm:$0xff]
    %v107 = vld [vmem:[#allocation2 + $0x138] sm:$0xff]
    %v108 = vld [vmem:[#allocation2 + $0x140] sm:$0xff]
    %v109 = vld [vmem:[#allocation2 + $0x148] sm:$0xff]
    %v110 = vld [vmem:[#allocation2 + $0x150] sm:$0xff]
    %v111 = vld [vmem:[#allocation2 + $0x158] sm:$0xff]
    %v112 = vld [vmem:[#allocation2 + $0x160] sm:$0xff]
    %v113 = vld [vmem:[#allocation2 + $0x168] sm:$0xff]
    %v114 = vld [vmem:[#allocation2 + $0x170] sm:$0xff]
    %v115 = vld [vmem:[#allocation2 + $0x178] sm:$0xff]
    %v116 = vld [vmem:[#allocation2 + $0x180] sm:$0xff]
    %v117 = vld [vmem:[#allocation2 + $0x188] sm:$0xff]
    %v118 = vld [vmem:[#allocation2 + $0x190] sm:$0xff]
    %v119 = vld [vmem:[#allocation2 + $0x198] sm:$0xff]
    %v120 = vld [vmem:[#allocation2 + $0x1a0] sm:$0xff]
    %v121 = vld [vmem:[#allocation2 + $0x1a8] sm:$0xff]
    %v122 = vld [vmem:[#allocation2 + $0x1b0] sm:$0xff]
    %v123 = vld [vmem:[#allocation2 + $0x1b8] sm:$0xff]
    %v124 = vld [vmem:[#allocation2 + $0x1c0] sm:$0xff]
    %v125 = vld [vmem:[#allocation2 + $0x1c8] sm:$0xff]
    %v126 = vld [vmem:[#allocation2 + $0x1d0] sm:$0xff]
    %v127 = vld [vmem:[#allocation2 + $0x1d8] sm:$0xff]
    %v128 = vld [vmem:[#allocation2 + $0x1e0] sm:$0xff]
    %v129 = vld [vmem:[#allocation2 + $0x1e8] sm:$0xff]
    %v130 = vld [vmem:[#allocation2 + $0x1f0] sm:$0xff]
    %v131 = vld [vmem:[#allocation2 + $0x1f8] sm:$0xff]
    %132 = vmatprep.subr.mxu0 %v69
    %133 = vmatpush1.msra.mxu0 %v68
    %134 = vmatprep.subr.mxu0 %v73
    %135 = vmatpush1.msra.mxu0 %v72
    %136 = vmatprep.subr.mxu0 %v77
    %137 = vmatpush1.msra.mxu0 %v76
    %138 = vmatprep.subr.mxu0 %v81
    %139 = vmatpush1.msra.mxu0 %v80
    %140 = vmatprep.subr.mxu0 %v85
    %141 = vmatpush1.msra.mxu0 %v84
    %142 = vmatprep.subr.mxu0 %v89
    %143 = vmatpush1.msra.mxu0 %v88
    %144 = vmatprep.subr.mxu0 %v93
    %145 = vmatpush1.msra.mxu0 %v92
    %146 = vmatprep.subr.mxu0 %v97
    %147 = vmatpush1.msra.mxu0 %v96
    %148 = vmatprep.subr.mxu0 %v101
    %149 = vmatpush1.msra.mxu0 %v100
    %150 = vmatprep.subr.mxu0 %v105
    %151 = vmatpush1.msra.mxu0 %v104
    %152 = vmatprep.subr.mxu0 %v109
    %153 = vmatpush1.msra.mxu0 %v108
    %154 = vmatprep.subr.mxu0 %v113
    %155 = vmatpush1.msra.mxu0 %v112
    %156 = vmatprep.subr.mxu0 %v117
    %157 = vmatpush1.msra.mxu0 %v116
    %158 = vmatprep.subr.mxu0 %v121
    %159 = vmatpush1.msra.mxu0 %v120
    %160 = vmatprep.subr.mxu0 %v125
    %161 = vmatpush1.msra.mxu0 %v124
    %162 = vmatprep.subr.mxu0 %v129
    %163 = vmatpush1.msra.mxu0 %v128
    %164 = vmatprep.subr.mxu0 0.0
    %165 = vmatpush1.msra.mxu0 0.0
    %166 = vmatprep.subr.mxu0 0.0
    %167 = vmatpush1.msra.mxu0 0.0
    %168 = vmatprep.subr.mxu0 0.0
    %169 = vmatpush1.msra.mxu0 0.0
    %170 = vmatprep.subr.mxu0 0.0
    %171 = vmatpush1.msra.mxu0 0.0
    %172 = vmatprep.subr.mxu0 0.0
    %173 = vmatpush1.msra.mxu0 0.0
    %174 = vmatprep.subr.mxu0 0.0
    %175 = vmatpush1.msra.mxu0 0.0
    %176 = vmatprep.subr.mxu0 0.0
    %177 = vmatpush1.msra.mxu0 0.0
    %178 = vmatprep.subr.mxu0 0.0
    %179 = vmatpush1.msra.mxu0 0.0
    %180 = vmatprep.subr.mxu0 0.0
    %181 = vmatpush1.msra.mxu0 0.0
    %182 = vmatprep.subr.mxu0 0.0
    %183 = vmatpush1.msra.mxu0 0.0
    %184 = vmatprep.subr.mxu0 0.0
    %185 = vmatpush1.msra.mxu0 0.0
    %186 = vmatprep.subr.mxu0 0.0
    %187 = vmatpush1.msra.mxu0 0.0
    %188 = vmatprep.subr.mxu0 0.0
    %189 = vmatpush1.msra.mxu0 0.0
    %190 = vmatprep.subr.mxu0 0.0
    %191 = vmatpush1.msra.mxu0 0.0
    %192 = vmatprep.subr.mxu0 0.0
    %193 = vmatpush1.msra.mxu0 0.0
    %194 = vmatprep.subr.mxu0 0.0
    %195 = vmatpush1.msra.mxu0 0.0
    %196 = vmatprep.mubr.f32.mxu0 0.0
    %197 = vmatmul.mubr.f32.gmra.mrb[0].mxu0 %v64
    %v198 = vpop.f32.mrb[0].mxu0
    %v199 = vadd.f32 0.0, %v198
    %v200 = vpop.f32.mrb[0].mxu0
    %v201 = vadd.f32 0.0, %v200
    %202 = vdwg.mxu0
    %203 = vmatprep.subr.mxu0 %v71
    %204 = vmatpush1.msra.mxu0 %v70
    %205 = vmatprep.subr.mxu0 %v75
    %206 = vmatpush1.msra.mxu0 %v74
    %207 = vmatprep.subr.mxu0 %v79
    %208 = vmatpush1.msra.mxu0 %v78
    %209 = vmatprep.subr.mxu0 %v83
    %210 = vmatpush1.msra.mxu0 %v82
    %211 = vmatprep.subr.mxu0 %v87
    %212 = vmatpush1.msra.mxu0 %v86
    %213 = vmatprep.subr.mxu0 %v91
    %214 = vmatpush1.msra.mxu0 %v90
    %215 = vmatprep.subr.mxu0 %v95
    %216 = vmatpush1.msra.mxu0 %v94
    %217 = vmatprep.subr.mxu0 %v99
    %218 = vmatpush1.msra.mxu0 %v98
    %219 = vmatprep.subr.mxu0 %v103
    %220 = vmatpush1.msra.mxu0 %v102
    %221 = vmatprep.subr.mxu0 %v107
    %222 = vmatpush1.msra.mxu0 %v106
    %223 = vmatprep.subr.mxu0 %v111
    %224 = vmatpush1.msra.mxu0 %v110
    %225 = vmatprep.subr.mxu0 %v115
    %226 = vmatpush1.msra.mxu0 %v114
    %227 = vmatprep.subr.mxu0 %v119
    %228 = vmatpush1.msra.mxu0 %v118
    %229 = vmatprep.subr.mxu0 %v123
    %230 = vmatpush1.msra.mxu0 %v122
    %231 = vmatprep.subr.mxu0 %v127
    %232 = vmatpush1.msra.mxu0 %v126
    %233 = vmatprep.subr.mxu0 %v131
    %234 = vmatpush1.msra.mxu0 %v130
    %235 = vmatprep.subr.mxu0 0.0
    %236 = vmatpush1.msra.mxu0 0.0
    %237 = vmatprep.subr.mxu0 0.0
    %238 = vmatpush1.msra.mxu0 0.0
    %239 = vmatprep.subr.mxu0 0.0
    %240 = vmatpush1.msra.mxu0 0.0
    %241 = vmatprep.subr.mxu0 0.0
    %242 = vmatpush1.msra.mxu0 0.0
    %243 = vmatprep.subr.mxu0 0.0
    %244 = vmatpush1.msra.mxu0 0.0
    %245 = vmatprep.subr.mxu0 0.0
    %246 = vmatpush1.msra.mxu0 0.0
    %247 = vmatprep.subr.mxu0 0.0
    %248 = vmatpush1.msra.mxu0 0.0
    %249 = vmatprep.subr.mxu0 0.0
    %250 = vmatpush1.msra.mxu0 0.0
    %251 = vmatprep.subr.mxu0 0.0
    %252 = vmatpush1.msra.mxu0 0.0
    %253 = vmatprep.subr.mxu0 0.0
    %254 = vmatpush1.msra.mxu0 0.0
    %255 = vmatprep.subr.mxu0 0.0
    %256 = vmatpush1.msra.mxu0 0.0
    %257 = vmatprep.subr.mxu0 0.0
    %258 = vmatpush1.msra.mxu0 0.0
    %259 = vmatprep.subr.mxu0 0.0
    %260 = vmatpush1.msra.mxu0 0.0
    %261 = vmatprep.subr.mxu0 0.0
    %262 = vmatpush1.msra.mxu0 0.0
    %263 = vmatprep.subr.mxu0 0.0
    %264 = vmatpush1.msra.mxu0 0.0
    %265 = vmatprep.subr.mxu0 0.0
    %266 = vmatpush1.msra.mxu0 0.0
    %267 = vmatprep.mubr.f32.mxu0 0.0
    %268 = vmatmul.mubr.f32.gmra.mrb[0].mxu0 %v64
    %v269 = vpop.f32.mrb[0].mxu0
    %v270 = vadd.f32 0.0, %v269
    %v271 = vpop.f32.mrb[0].mxu0
    %v272 = vadd.f32 0.0, %v271
    %273 = vdwg.mxu0
    %v278 = vcombine.low %v199, %v201
    %v279 = vcombine.low %v270, %v272
    %v281 = vunpack.c.l.s4 1983009808
    %v282 = vunpack.c.0.s8 %v281
    %v283 = vlaneseq
    %v284 = vshrl.u32 %v283, 7
    %v285 = vsub.s32 %v282, %v284
    %v286 = vrot.slane %v278, %v285
    %v288 = vunpack.c.l.s4 1983009808
    %v289 = vunpack.c.0.s8 %v288
    %v290 = vlaneseq
    %v291 = vshrl.u32 %v290, 7
    %v292 = vsub.s32 %v289, %v291
    %v293 = vrot.slane %v279, %v292
    %v294 = vcombine.low %v286, %v293
    %v296 = vadd.f32 %v67, %v294
    %v297 = vxor.u32 %v296, 2147483648
    %v298 = vmul.f32 %v297, 1.442695
    %v299 = vpow.pop %v298
    %v300 = vadd.f32 %v299, 1.0
    %v301 = vrcp.pop %v300
    %v302 = vmul.f32 1.0, %v301
    %v304 = vrot.slane %v296, 2
    %v306 = vxor.u32 %v304, 2147483648
    %v307 = vmul.f32 %v306, 1.442695
    %v308 = vpow.pop %v307
    %v309 = vadd.f32 %v308, 1.0
    %v310 = vrcp.pop %v309
    %v311 = vmul.f32 1.0, %v310
    %v312 = vrot.slane %v296, 4
    %v314 = vtanh.pop %v312
    %v315 = vrot.slane %v296, 6
    %v317 = vxor.u32 %v315, 2147483648
    %v318 = vmul.f32 %v317, 1.442695
    %v319 = vpow.pop %v318
    %v320 = vadd.f32 %v319, 1.0
    %v321 = vrcp.pop %v320
    %v322 = vmul.f32 1.0, %v321
    %v323 = vmul.f32 %v311, %v65
    %v324 = vmul.f32 %v302, %v314
    %v325 = vadd.f32 %v323, %v324
    %v326 = vtanh.pop %v325
    %v327 = vmul.f32 %v322, %v326
    %v330 = vunpack.c.l.s4 1966171168
    %v331 = vunpack.c.0.s8 %v330
    %v332 = vlaneseq
    %v333 = vshrl.u32 %v332, 7
    %v334 = vsub.s32 %v331, %v333
    %v335 = vrot.slane %v327, %v334
    %v336 = vcombine.high %v335, %v335
    %v337 = vlaneseq
    %v338 = vshrl.u32 %v337, 7
    %v339 = vsub.s32 0, %v338
    %v340 = vrot.slane %v335, %v339
    %v341 = vlaneseq
    %v342 = vshrl.u32 %v341, 7
    %v343 = vsub.s32 0, %v342
    %v344 = vrot.slane %v336, %v343
    %345 = vrot.lane.b32.xlu0 %v340, 64
    %v346 = vpop.permute.xlu0 %345
    %347 = vrot.lane.b32.xlu0 %v344, 64
    %v348 = vpop.permute.xlu0 %347
    %vm351 = vcmask 516096
    %352 = vst.msk [vmem:[#allocation5] sm:$0x1] %vm351, %v346
    %353 = vst.msk [vmem:[#allocation5 + $0x8] sm:$0x1] %vm351, %v348
    %s354 = scalar_lea.vmem %s0, 16
    %v355 = vld [vmem:[%s354] sm:$0xff]
    %v356 = vld [vmem:[#allocation2] sm:$0xff]
    %v357 = vld [vmem:[#allocation2 + $0x8] sm:$0xff]
    %v358 = vld [vmem:[#allocation2 + $0x10] sm:$0xff]
    %v359 = vld [vmem:[#allocation2 + $0x18] sm:$0xff]
    %v360 = vld [vmem:[#allocation2 + $0x20] sm:$0xff]
    %v361 = vld [vmem:[#allocation2 + $0x28] sm:$0xff]
    %v362 = vld [vmem:[#allocation2 + $0x30] sm:$0xff]
    %v363 = vld [vmem:[#allocation2 + $0x38] sm:$0xff]
    %v364 = vld [vmem:[#allocation2 + $0x40] sm:$0xff]
    %v365 = vld [vmem:[#allocation2 + $0x48] sm:$0xff]
    %v366 = vld [vmem:[#allocation2 + $0x50] sm:$0xff]
    %v367 = vld [vmem:[#allocation2 + $0x58] sm:$0xff]
    %v368 = vld [vmem:[#allocation2 + $0x60] sm:$0xff]
    %v369 = vld [vmem:[#allocation2 + $0x68] sm:$0xff]
    %v370 = vld [vmem:[#allocation2 + $0x70] sm:$0xff]
    %v371 = vld [vmem:[#allocation2 + $0x78] sm:$0xff]
    %v372 = vld [vmem:[#allocation2 + $0x80] sm:$0xff]
    %v373 = vld [vmem:[#allocation2 + $0x88] sm:$0xff]
    %v374 = vld [vmem:[#allocation2 + $0x90] sm:$0xff]
    %v375 = vld [vmem:[#allocation2 + $0x98] sm:$0xff]
    %v376 = vld [vmem:[#allocation2 + $0xa0] sm:$0xff]
    %v377 = vld [vmem:[#allocation2 + $0xa8] sm:$0xff]
    %v378 = vld [vmem:[#allocation2 + $0xb0] sm:$0xff]
    %v379 = vld [vmem:[#allocation2 + $0xb8] sm:$0xff]
    %v380 = vld [vmem:[#allocation2 + $0xc0] sm:$0xff]
    %v381 = vld [vmem:[#allocation2 + $0xc8] sm:$0xff]
    %v382 = vld [vmem:[#allocation2 + $0xd0] sm:$0xff]
    %v383 = vld [vmem:[#allocation2 + $0xd8] sm:$0xff]
    %v384 = vld [vmem:[#allocation2 + $0xe0] sm:$0xff]
    %v385 = vld [vmem:[#allocation2 + $0xe8] sm:$0xff]
    %v386 = vld [vmem:[#allocation2 + $0xf0] sm:$0xff]
    %v387 = vld [vmem:[#allocation2 + $0xf8] sm:$0xff]
    %v388 = vld [vmem:[#allocation2 + $0x100] sm:$0xff]
    %v389 = vld [vmem:[#allocation2 + $0x108] sm:$0xff]
    %v390 = vld [vmem:[#allocation2 + $0x110] sm:$0xff]
    %v391 = vld [vmem:[#allocation2 + $0x118] sm:$0xff]
    %v392 = vld [vmem:[#allocation2 + $0x120] sm:$0xff]
    %v393 = vld [vmem:[#allocation2 + $0x128] sm:$0xff]
    %v394 = vld [vmem:[#allocation2 + $0x130] sm:$0xff]
    %v395 = vld [vmem:[#allocation2 + $0x138] sm:$0xff]
    %v396 = vld [vmem:[#allocation2 + $0x140] sm:$0xff]
    %v397 = vld [vmem:[#allocation2 + $0x148] sm:$0xff]
    %v398 = vld [vmem:[#allocation2 + $0x150] sm:$0xff]
    %v399 = vld [vmem:[#allocation2 + $0x158] sm:$0xff]
    %v400 = vld [vmem:[#allocation2 + $0x160] sm:$0xff]
    %v401 = vld [vmem:[#allocation2 + $0x168] sm:$0xff]
    %v402 = vld [vmem:[#allocation2 + $0x170] sm:$0xff]
    %v403 = vld [vmem:[#allocation2 + $0x178] sm:$0xff]
    %v404 = vld [vmem:[#allocation2 + $0x180] sm:$0xff]
    %v405 = vld [vmem:[#allocation2 + $0x188] sm:$0xff]
    %v406 = vld [vmem:[#allocation2 + $0x190] sm:$0xff]
    %v407 = vld [vmem:[#allocation2 + $0x198] sm:$0xff]
    %v408 = vld [vmem:[#allocation2 + $0x1a0] sm:$0xff]
    %v409 = vld [vmem:[#allocation2 + $0x1a8] sm:$0xff]
    %v410 = vld [vmem:[#allocation2 + $0x1b0] sm:$0xff]
    %v411 = vld [vmem:[#allocation2 + $0x1b8] sm:$0xff]
    %v412 = vld [vmem:[#allocation2 + $0x1c0] sm:$0xff]
    %v413 = vld [vmem:[#allocation2 + $0x1c8] sm:$0xff]
    %v414 = vld [vmem:[#allocation2 + $0x1d0] sm:$0xff]
    %v415 = vld [vmem:[#allocation2 + $0x1d8] sm:$0xff]
    %v416 = vld [vmem:[#allocation2 + $0x1e0] sm:$0xff]
    %v417 = vld [vmem:[#allocation2 + $0x1e8] sm:$0xff]
    %v418 = vld [vmem:[#allocation2 + $0x1f0] sm:$0xff]
    %v419 = vld [vmem:[#allocation2 + $0x1f8] sm:$0xff]
    %420 = vmatprep.subr.mxu0 %v357
    %421 = vmatpush1.msra.mxu0 %v356
    %422 = vmatprep.subr.mxu0 %v361
    %423 = vmatpush1.msra.mxu0 %v360
    %424 = vmatprep.subr.mxu0 %v365
    %425 = vmatpush1.msra.mxu0 %v364
    %426 = vmatprep.subr.mxu0 %v369
    %427 = vmatpush1.msra.mxu0 %v368
    %428 = vmatprep.subr.mxu0 %v373
    %429 = vmatpush1.msra.mxu0 %v372
    %430 = vmatprep.subr.mxu0 %v377
    %431 = vmatpush1.msra.mxu0 %v376
    %432 = vmatprep.subr.mxu0 %v381
    %433 = vmatpush1.msra.mxu0 %v380
    %434 = vmatprep.subr.mxu0 %v385
    %435 = vmatpush1.msra.mxu0 %v384
    %436 = vmatprep.subr.mxu0 %v389
    %437 = vmatpush1.msra.mxu0 %v388
    %438 = vmatprep.subr.mxu0 %v393
    %439 = vmatpush1.msra.mxu0 %v392
    %440 = vmatprep.subr.mxu0 %v397
    %441 = vmatpush1.msra.mxu0 %v396
    %442 = vmatprep.subr.mxu0 %v401
    %443 = vmatpush1.msra.mxu0 %v400
    %444 = vmatprep.subr.mxu0 %v405
    %445 = vmatpush1.msra.mxu0 %v404
    %446 = vmatprep.subr.mxu0 %v409
    %447 = vmatpush1.msra.mxu0 %v408
    %448 = vmatprep.subr.mxu0 %v413
    %449 = vmatpush1.msra.mxu0 %v412
    %450 = vmatprep.subr.mxu0 %v417
    %451 = vmatpush1.msra.mxu0 %v416
    %452 = vmatprep.subr.mxu0 0.0
    %453 = vmatpush1.msra.mxu0 0.0
    %454 = vmatprep.subr.mxu0 0.0
    %455 = vmatpush1.msra.mxu0 0.0
    %456 = vmatprep.subr.mxu0 0.0
    %457 = vmatpush1.msra.mxu0 0.0
    %458 = vmatprep.subr.mxu0 0.0
    %459 = vmatpush1.msra.mxu0 0.0
    %460 = vmatprep.subr.mxu0 0.0
    %461 = vmatpush1.msra.mxu0 0.0
    %462 = vmatprep.subr.mxu0 0.0
    %463 = vmatpush1.msra.mxu0 0.0
    %464 = vmatprep.subr.mxu0 0.0
    %465 = vmatpush1.msra.mxu0 0.0
    %466 = vmatprep.subr.mxu0 0.0
    %467 = vmatpush1.msra.mxu0 0.0
    %468 = vmatprep.subr.mxu0 0.0
    %469 = vmatpush1.msra.mxu0 0.0
    %470 = vmatprep.subr.mxu0 0.0
    %471 = vmatpush1.msra.mxu0 0.0
    %472 = vmatprep.subr.mxu0 0.0
    %473 = vmatpush1.msra.mxu0 0.0
    %474 = vmatprep.subr.mxu0 0.0
    %475 = vmatpush1.msra.mxu0 0.0
    %476 = vmatprep.subr.mxu0 0.0
    %477 = vmatpush1.msra.mxu0 0.0
    %478 = vmatprep.subr.mxu0 0.0
    %479 = vmatpush1.msra.mxu0 0.0
    %480 = vmatprep.subr.mxu0 0.0
    %481 = vmatpush1.msra.mxu0 0.0
    %482 = vmatprep.subr.mxu0 0.0
    %483 = vmatpush1.msra.mxu0 0.0
    %484 = vmatprep.mubr.f32.mxu0 0.0
    %485 = vmatmul.mubr.f32.gmra.mrb[0].mxu0 %v327
    %v486 = vpop.f32.mrb[0].mxu0
    %v487 = vadd.f32 0.0, %v486
    %v488 = vpop.f32.mrb[0].mxu0
    %v489 = vadd.f32 0.0, %v488
    %490 = vdwg.mxu0
    %491 = vmatprep.subr.mxu0 %v359
    %492 = vmatpush1.msra.mxu0 %v358
    %493 = vmatprep.subr.mxu0 %v363
    %494 = vmatpush1.msra.mxu0 %v362
    %495 = vmatprep.subr.mxu0 %v367
    %496 = vmatpush1.msra.mxu0 %v366
    %497 = vmatprep.subr.mxu0 %v371
    %498 = vmatpush1.msra.mxu0 %v370
    %499 = vmatprep.subr.mxu0 %v375
    %500 = vmatpush1.msra.mxu0 %v374
    %501 = vmatprep.subr.mxu0 %v379
    %502 = vmatpush1.msra.mxu0 %v378
    %503 = vmatprep.subr.mxu0 %v383
    %504 = vmatpush1.msra.mxu0 %v382
    %505 = vmatprep.subr.mxu0 %v387
    %506 = vmatpush1.msra.mxu0 %v386
    %507 = vmatprep.subr.mxu0 %v391
    %508 = vmatpush1.msra.mxu0 %v390
    %509 = vmatprep.subr.mxu0 %v395
    %510 = vmatpush1.msra.mxu0 %v394
    %511 = vmatprep.subr.mxu0 %v399
    %512 = vmatpush1.msra.mxu0 %v398
    %513 = vmatprep.subr.mxu0 %v403
    %514 = vmatpush1.msra.mxu0 %v402
    %515 = vmatprep.subr.mxu0 %v407
    %516 = vmatpush1.msra.mxu0 %v406
    %517 = vmatprep.subr.mxu0 %v411
    %518 = vmatpush1.msra.mxu0 %v410
    %519 = vmatprep.subr.mxu0 %v415
    %520 = vmatpush1.msra.mxu0 %v414
    %521 = vmatprep.subr.mxu0 %v419
    %522 = vmatpush1.msra.mxu0 %v418
    %523 = vmatprep.subr.mxu0 0.0
    %524 = vmatpush1.msra.mxu0 0.0
    %525 = vmatprep.subr.mxu0 0.0
    %526 = vmatpush1.msra.mxu0 0.0
    %527 = vmatprep.subr.mxu0 0.0
    %528 = vmatpush1.msra.mxu0 0.0
    %529 = vmatprep.subr.mxu0 0.0
    %530 = vmatpush1.msra.mxu0 0.0
    %531 = vmatprep.subr.mxu0 0.0
    %532 = vmatpush1.msra.mxu0 0.0
    %533 = vmatprep.subr.mxu0 0.0
    %534 = vmatpush1.msra.mxu0 0.0
    %535 = vmatprep.subr.mxu0 0.0
    %536 = vmatpush1.msra.mxu0 0.0
    %537 = vmatprep.subr.mxu0 0.0
    %538 = vmatpush1.msra.mxu0 0.0
    %539 = vmatprep.subr.mxu0 0.0
    %540 = vmatpush1.msra.mxu0 0.0
    %541 = vmatprep.subr.mxu0 0.0
    %542 = vmatpush1.msra.mxu0 0.0
    %543 = vmatprep.subr.mxu0 0.0
    %544 = vmatpush1.msra.mxu0 0.0
    %545 = vmatprep.subr.mxu0 0.0
    %546 = vmatpush1.msra.mxu0 0.0
    %547 = vmatprep.subr.mxu0 0.0
    %548 = vmatpush1.msra.mxu0 0.0
    %549 = vmatprep.subr.mxu0 0.0
    %550 = vmatpush1.msra.mxu0 0.0
    %551 = vmatprep.subr.mxu0 0.0
    %552 = vmatpush1.msra.mxu0 0.0
    %553 = vmatprep.subr.mxu0 0.0
    %554 = vmatpush1.msra.mxu0 0.0
    %555 = vmatprep.mubr.f32.mxu0 0.0
    %556 = vmatmul.mubr.f32.gmra.mrb[0].mxu0 %v327
    %v557 = vpop.f32.mrb[0].mxu0
    %v558 = vadd.f32 0.0, %v557
    %v559 = vpop.f32.mrb[0].mxu0
    %v560 = vadd.f32 0.0, %v559
    %561 = vdwg.mxu0
    %v566 = vcombine.low %v487, %v489
    %v567 = vcombine.low %v558, %v560
    %v569 = vunpack.c.l.s4 1983009808
    %v570 = vunpack.c.0.s8 %v569
    %v571 = vlaneseq
    %v572 = vshrl.u32 %v571, 7
    %v573 = vsub.s32 %v570, %v572
    %v574 = vrot.slane %v566, %v573
    %v576 = vunpack.c.l.s4 1983009808
    %v577 = vunpack.c.0.s8 %v576
    %v578 = vlaneseq
    %v579 = vshrl.u32 %v578, 7
    %v580 = vsub.s32 %v577, %v579
    %v581 = vrot.slane %v567, %v580
    %v582 = vcombine.low %v574, %v581
    %v584 = vadd.f32 %v355, %v582
    %v585 = vxor.u32 %v584, 2147483648
    %v586 = vmul.f32 %v585, 1.442695
    %v587 = vpow.pop %v586
    %v588 = vadd.f32 %v587, 1.0
    %v589 = vrcp.pop %v588
    %v590 = vmul.f32 1.0, %v589
    %v592 = vrot.slane %v584, 2
    %v594 = vxor.u32 %v592, 2147483648
    %v595 = vmul.f32 %v594, 1.442695
    %v596 = vpow.pop %v595
    %v597 = vadd.f32 %v596, 1.0
    %v598 = vrcp.pop %v597
    %v599 = vmul.f32 1.0, %v598
    %v600 = vrot.slane %v584, 4
    %v602 = vtanh.pop %v600
    %v603 = vrot.slane %v584, 6
    %v605 = vxor.u32 %v603, 2147483648
    %v606 = vmul.f32 %v605, 1.442695
    %v607 = vpow.pop %v606
    %v608 = vadd.f32 %v607, 1.0
    %v609 = vrcp.pop %v608
    %v610 = vmul.f32 1.0, %v609
    %v611 = vmul.f32 %v599, %v325
    %v612 = vmul.f32 %v590, %v602
    %v613 = vadd.f32 %v611, %v612
    %v614 = vtanh.pop %v613
    %v615 = vmul.f32 %v610, %v614
    %v618 = vunpack.c.l.s4 1966171168
    %v619 = vunpack.c.0.s8 %v618
    %v620 = vlaneseq
    %v621 = vshrl.u32 %v620, 7
    %v622 = vsub.s32 %v619, %v621
    %v623 = vrot.slane %v615, %v622
    %v624 = vcombine.high %v623, %v623
    %v625 = vlaneseq
    %v626 = vshrl.u32 %v625, 7
    %v627 = vsub.s32 0, %v626
    %v628 = vrot.slane %v623, %v627
    %v629 = vlaneseq
    %v630 = vshrl.u32 %v629, 7
    %v631 = vsub.s32 0, %v630
    %v632 = vrot.slane %v624, %v631
    %633 = vrot.lane.b32.xlu0 %v628, 64
    %v634 = vpop.permute.xlu0 %633
    %635 = vrot.lane.b32.xlu0 %v632, 64
    %v636 = vpop.permute.xlu0 %635
    %639 = vst.msk [vmem:[#allocation5 + $0x1] sm:$0x1] %vm351, %v634
    %640 = vst.msk [vmem:[#allocation5 + $0x9] sm:$0x1] %vm351, %v636
    %s641 = scalar_lea.vmem %s0, 24
    %v642 = vld [vmem:[%s641] sm:$0xff]
    %v643 = vld [vmem:[#allocation2] sm:$0xff]
    %v644 = vld [vmem:[#allocation2 + $0x8] sm:$0xff]
    %v645 = vld [vmem:[#allocation2 + $0x10] sm:$0xff]
    %v646 = vld [vmem:[#allocation2 + $0x18] sm:$0xff]
    %v647 = vld [vmem:[#allocation2 + $0x20] sm:$0xff]
    %v648 = vld [vmem:[#allocation2 + $0x28] sm:$0xff]
    %v649 = vld [vmem:[#allocation2 + $0x30] sm:$0xff]
    %v650 = vld [vmem:[#allocation2 + $0x38] sm:$0xff]
    %v651 = vld [vmem:[#allocation2 + $0x40] sm:$0xff]
    %v652 = vld [vmem:[#allocation2 + $0x48] sm:$0xff]
    %v653 = vld [vmem:[#allocation2 + $0x50] sm:$0xff]
    %v654 = vld [vmem:[#allocation2 + $0x58] sm:$0xff]
    %v655 = vld [vmem:[#allocation2 + $0x60] sm:$0xff]
    %v656 = vld [vmem:[#allocation2 + $0x68] sm:$0xff]
    %v657 = vld [vmem:[#allocation2 + $0x70] sm:$0xff]
    %v658 = vld [vmem:[#allocation2 + $0x78] sm:$0xff]
    %v659 = vld [vmem:[#allocation2 + $0x80] sm:$0xff]
    %v660 = vld [vmem:[#allocation2 + $0x88] sm:$0xff]
    %v661 = vld [vmem:[#allocation2 + $0x90] sm:$0xff]
    %v662 = vld [vmem:[#allocation2 + $0x98] sm:$0xff]
    %v663 = vld [vmem:[#allocation2 + $0xa0] sm:$0xff]
    %v664 = vld [vmem:[#allocation2 + $0xa8] sm:$0xff]
    %v665 = vld [vmem:[#allocation2 + $0xb0] sm:$0xff]
    %v666 = vld [vmem:[#allocation2 + $0xb8] sm:$0xff]
    %v667 = vld [vmem:[#allocation2 + $0xc0] sm:$0xff]
    %v668 = vld [vmem:[#allocation2 + $0xc8] sm:$0xff]
    %v669 = vld [vmem:[#allocation2 + $0xd0] sm:$0xff]
    %v670 = vld [vmem:[#allocation2 + $0xd8] sm:$0xff]
    %v671 = vld [vmem:[#allocation2 + $0xe0] sm:$0xff]
    %v672 = vld [vmem:[#allocation2 + $0xe8] sm:$0xff]
    %v673 = vld [vmem:[#allocation2 + $0xf0] sm:$0xff]
    %v674 = vld [vmem:[#allocation2 + $0xf8] sm:$0xff]
    %v675 = vld [vmem:[#allocation2 + $0x100] sm:$0xff]
    %v676 = vld [vmem:[#allocation2 + $0x108] sm:$0xff]
    %v677 = vld [vmem:[#allocation2 + $0x110] sm:$0xff]
    %v678 = vld [vmem:[#allocation2 + $0x118] sm:$0xff]
    %v679 = vld [vmem:[#allocation2 + $0x120] sm:$0xff]
    %v680 = vld [vmem:[#allocation2 + $0x128] sm:$0xff]
    %v681 = vld [vmem:[#allocation2 + $0x130] sm:$0xff]
    %v682 = vld [vmem:[#allocation2 + $0x138] sm:$0xff]
    %v683 = vld [vmem:[#allocation2 + $0x140] sm:$0xff]
    %v684 = vld [vmem:[#allocation2 + $0x148] sm:$0xff]
    %v685 = vld [vmem:[#allocation2 + $0x150] sm:$0xff]
    %v686 = vld [vmem:[#allocation2 + $0x158] sm:$0xff]
    %v687 = vld [vmem:[#allocation2 + $0x160] sm:$0xff]
    %v688 = vld [vmem:[#allocation2 + $0x168] sm:$0xff]
    %v689 = vld [vmem:[#allocation2 + $0x170] sm:$0xff]
    %v690 = vld [vmem:[#allocation2 + $0x178] sm:$0xff]
    %v691 = vld [vmem:[#allocation2 + $0x180] sm:$0xff]
    %v692 = vld [vmem:[#allocation2 + $0x188] sm:$0xff]
    %v693 = vld [vmem:[#allocation2 + $0x190] sm:$0xff]
    %v694 = vld [vmem:[#allocation2 + $0x198] sm:$0xff]
    %v695 = vld [vmem:[#allocation2 + $0x1a0] sm:$0xff]
    %v696 = vld [vmem:[#allocation2 + $0x1a8] sm:$0xff]
    %v697 = vld [vmem:[#allocation2 + $0x1b0] sm:$0xff]
    %v698 = vld [vmem:[#allocation2 + $0x1b8] sm:$0xff]
    %v699 = vld [vmem:[#allocation2 + $0x1c0] sm:$0xff]
    %v700 = vld [vmem:[#allocation2 + $0x1c8] sm:$0xff]
    %v701 = vld [vmem:[#allocation2 + $0x1d0] sm:$0xff]
    %v702 = vld [vmem:[#allocation2 + $0x1d8] sm:$0xff]
    %v703 = vld [vmem:[#allocation2 + $0x1e0] sm:$0xff]
    %v704 = vld [vmem:[#allocation2 + $0x1e8] sm:$0xff]
    %v705 = vld [vmem:[#allocation2 + $0x1f0] sm:$0xff]
    %v706 = vld [vmem:[#allocation2 + $0x1f8] sm:$0xff]
    %707 = vmatprep.subr.mxu0 %v644
    %708 = vmatpush1.msra.mxu0 %v643
    %709 = vmatprep.subr.mxu0 %v648
    %710 = vmatpush1.msra.mxu0 %v647
    %711 = vmatprep.subr.mxu0 %v652
    %712 = vmatpush1.msra.mxu0 %v651
    %713 = vmatprep.subr.mxu0 %v656
    %714 = vmatpush1.msra.mxu0 %v655
    %715 = vmatprep.subr.mxu0 %v660
    %716 = vmatpush1.msra.mxu0 %v659
    %717 = vmatprep.subr.mxu0 %v664
    %718 = vmatpush1.msra.mxu0 %v663
    %719 = vmatprep.subr.mxu0 %v668
    %720 = vmatpush1.msra.mxu0 %v667
    %721 = vmatprep.subr.mxu0 %v672
    %722 = vmatpush1.msra.mxu0 %v671
    %723 = vmatprep.subr.mxu0 %v676
    %724 = vmatpush1.msra.mxu0 %v675
    %725 = vmatprep.subr.mxu0 %v680
    %726 = vmatpush1.msra.mxu0 %v679
    %727 = vmatprep.subr.mxu0 %v684
    %728 = vmatpush1.msra.mxu0 %v683
    %729 = vmatprep.subr.mxu0 %v688
    %730 = vmatpush1.msra.mxu0 %v687
    %731 = vmatprep.subr.mxu0 %v692
    %732 = vmatpush1.msra.mxu0 %v691
    %733 = vmatprep.subr.mxu0 %v696
    %734 = vmatpush1.msra.mxu0 %v695
    %735 = vmatprep.subr.mxu0 %v700
    %736 = vmatpush1.msra.mxu0 %v699
    %737 = vmatprep.subr.mxu0 %v704
    %738 = vmatpush1.msra.mxu0 %v703
    %739 = vmatprep.subr.mxu0 0.0
    %740 = vmatpush1.msra.mxu0 0.0
    %741 = vmatprep.subr.mxu0 0.0
    %742 = vmatpush1.msra.mxu0 0.0
    %743 = vmatprep.subr.mxu0 0.0
    %744 = vmatpush1.msra.mxu0 0.0
    %745 = vmatprep.subr.mxu0 0.0
    %746 = vmatpush1.msra.mxu0 0.0
    %747 = vmatprep.subr.mxu0 0.0
    %748 = vmatpush1.msra.mxu0 0.0
    %749 = vmatprep.subr.mxu0 0.0
    %750 = vmatpush1.msra.mxu0 0.0
    %751 = vmatprep.subr.mxu0 0.0
    %752 = vmatpush1.msra.mxu0 0.0
    %753 = vmatprep.subr.mxu0 0.0
    %754 = vmatpush1.msra.mxu0 0.0
    %755 = vmatprep.subr.mxu0 0.0
    %756 = vmatpush1.msra.mxu0 0.0
    %757 = vmatprep.subr.mxu0 0.0
    %758 = vmatpush1.msra.mxu0 0.0
    %759 = vmatprep.subr.mxu0 0.0
    %760 = vmatpush1.msra.mxu0 0.0
    %761 = vmatprep.subr.mxu0 0.0
    %762 = vmatpush1.msra.mxu0 0.0
    %763 = vmatprep.subr.mxu0 0.0
    %764 = vmatpush1.msra.mxu0 0.0
    %765 = vmatprep.subr.mxu0 0.0
    %766 = vmatpush1.msra.mxu0 0.0
    %767 = vmatprep.subr.mxu0 0.0
    %768 = vmatpush1.msra.mxu0 0.0
    %769 = vmatprep.subr.mxu0 0.0
    %770 = vmatpush1.msra.mxu0 0.0
    %771 = vmatprep.mubr.f32.mxu0 0.0
    %772 = vmatmul.mubr.f32.gmra.mrb[0].mxu0 %v615
    %v773 = vpop.f32.mrb[0].mxu0
    %v774 = vadd.f32 0.0, %v773
    %v775 = vpop.f32.mrb[0].mxu0
    %v776 = vadd.f32 0.0, %v775
    %777 = vdwg.mxu0
    %778 = vmatprep.subr.mxu0 %v646
    %779 = vmatpush1.msra.mxu0 %v645
    %780 = vmatprep.subr.mxu0 %v650
    %781 = vmatpush1.msra.mxu0 %v649
    %782 = vmatprep.subr.mxu0 %v654
    %783 = vmatpush1.msra.mxu0 %v653
    %784 = vmatprep.subr.mxu0 %v658
    %785 = vmatpush1.msra.mxu0 %v657
    %786 = vmatprep.subr.mxu0 %v662
    %787 = vmatpush1.msra.mxu0 %v661
    %788 = vmatprep.subr.mxu0 %v666
    %789 = vmatpush1.msra.mxu0 %v665
    %790 = vmatprep.subr.mxu0 %v670
    %791 = vmatpush1.msra.mxu0 %v669
    %792 = vmatprep.subr.mxu0 %v674
    %793 = vmatpush1.msra.mxu0 %v673
    %794 = vmatprep.subr.mxu0 %v678
    %795 = vmatpush1.msra.mxu0 %v677
    %796 = vmatprep.subr.mxu0 %v682
    %797 = vmatpush1.msra.mxu0 %v681
    %798 = vmatprep.subr.mxu0 %v686
    %799 = vmatpush1.msra.mxu0 %v685
    %800 = vmatprep.subr.mxu0 %v690
    %801 = vmatpush1.msra.mxu0 %v689
    %802 = vmatprep.subr.mxu0 %v694
    %803 = vmatpush1.msra.mxu0 %v693
    %804 = vmatprep.subr.mxu0 %v698
    %805 = vmatpush1.msra.mxu0 %v697
    %806 = vmatprep.subr.mxu0 %v702
    %807 = vmatpush1.msra.mxu0 %v701
    %808 = vmatprep.subr.mxu0 %v706
    %809 = vmatpush1.msra.mxu0 %v705
    %810 = vmatprep.subr.mxu0 0.0
    %811 = vmatpush1.msra.mxu0 0.0
    %812 = vmatprep.subr.mxu0 0.0
    %813 = vmatpush1.msra.mxu0 0.0
    %814 = vmatprep.subr.mxu0 0.0
    %815 = vmatpush1.msra.mxu0 0.0
    %816 = vmatprep.subr.mxu0 0.0
    %817 = vmatpush1.msra.mxu0 0.0
    %818 = vmatprep.subr.mxu0 0.0
    %819 = vmatpush1.msra.mxu0 0.0
    %820 = vmatprep.subr.mxu0 0.0
    %821 = vmatpush1.msra.mxu0 0.0
    %822 = vmatprep.subr.mxu0 0.0
    %823 = vmatpush1.msra.mxu0 0.0
    %824 = vmatprep.subr.mxu0 0.0
    %825 = vmatpush1.msra.mxu0 0.0
    %826 = vmatprep.subr.mxu0 0.0
    %827 = vmatpush1.msra.mxu0 0.0
    %828 = vmatprep.subr.mxu0 0.0
    %829 = vmatpush1.msra.mxu0 0.0
    %830 = vmatprep.subr.mxu0 0.0
    %831 = vmatpush1.msra.mxu0 0.0
    %832 = vmatprep.subr.mxu0 0.0
    %833 = vmatpush1.msra.mxu0 0.0
    %834 = vmatprep.subr.mxu0 0.0
    %835 = vmatpush1.msra.mxu0 0.0
    %836 = vmatprep.subr.mxu0 0.0
    %837 = vmatpush1.msra.mxu0 0.0
    %838 = vmatprep.subr.mxu0 0.0
    %839 = vmatpush1.msra.mxu0 0.0
    %840 = vmatprep.subr.mxu0 0.0
    %841 = vmatpush1.msra.mxu0 0.0
    %842 = vmatprep.mubr.f32.mxu0 0.0
    %843 = vmatmul.mubr.f32.gmra.mrb[0].mxu0 %v615
    %v844 = vpop.f32.mrb[0].mxu0
    %v845 = vadd.f32 0.0, %v844
    %v846 = vpop.f32.mrb[0].mxu0
    %v847 = vadd.f32 0.0, %v846
    %848 = vdwg.mxu0
    %v853 = vcombine.low %v774, %v776
    %v854 = vcombine.low %v845, %v847
    %v856 = vunpack.c.l.s4 1983009808
    %v857 = vunpack.c.0.s8 %v856
    %v858 = vlaneseq
    %v859 = vshrl.u32 %v858, 7
    %v860 = vsub.s32 %v857, %v859
    %v861 = vrot.slane %v853, %v860
    %v863 = vunpack.c.l.s4 1983009808
    %v864 = vunpack.c.0.s8 %v863
    %v865 = vlaneseq
    %v866 = vshrl.u32 %v865, 7
    %v867 = vsub.s32 %v864, %v866
    %v868 = vrot.slane %v854, %v867
    %v869 = vcombine.low %v861, %v868
    %v871 = vadd.f32 %v642, %v869
    %v872 = vxor.u32 %v871, 2147483648
    %v873 = vmul.f32 %v872, 1.442695
    %v874 = vpow.pop %v873
    %v875 = vadd.f32 %v874, 1.0
    %v876 = vrcp.pop %v875
    %v877 = vmul.f32 1.0, %v876
    %v879 = vrot.slane %v871, 2
    %v881 = vxor.u32 %v879, 2147483648
    %v882 = vmul.f32 %v881, 1.442695
    %v883 = vpow.pop %v882
    %v884 = vadd.f32 %v883, 1.0
    %v885 = vrcp.pop %v884
    %v886 = vmul.f32 1.0, %v885
    %v887 = vrot.slane %v871, 4
    %v889 = vtanh.pop %v887
    %v890 = vrot.slane %v871, 6
    %v892 = vxor.u32 %v890, 2147483648
    %v893 = vmul.f32 %v892, 1.442695
    %v894 = vpow.pop %v893
    %v895 = vadd.f32 %v894, 1.0
    %v896 = vrcp.pop %v895
    %v897 = vmul.f32 1.0, %v896
    %v898 = vmul.f32 %v886, %v613
    %v899 = vmul.f32 %v877, %v889
    %v900 = vadd.f32 %v898, %v899
    %v901 = vtanh.pop %v900
    %v902 = vmul.f32 %v897, %v901
    %v905 = vunpack.c.l.s4 1966171168
    %v906 = vunpack.c.0.s8 %v905
    %v907 = vlaneseq
    %v908 = vshrl.u32 %v907, 7
    %v909 = vsub.s32 %v906, %v908
    %v910 = vrot.slane %v902, %v909
    %v911 = vcombine.high %v910, %v910
    %v912 = vlaneseq
    %v913 = vshrl.u32 %v912, 7
    %v914 = vsub.s32 0, %v913
    %v915 = vrot.slane %v910, %v914
    %v916 = vlaneseq
    %v917 = vshrl.u32 %v916, 7
    %v918 = vsub.s32 0, %v917
    %v919 = vrot.slane %v911, %v918
    %920 = vrot.lane.b32.xlu0 %v915, 64
    %v921 = vpop.permute.xlu0 %920
    %922 = vrot.lane.b32.xlu0 %v919, 64
    %v923 = vpop.permute.xlu0 %922
    %926 = vst.msk [vmem:[#allocation5 + $0x2] sm:$0x1] %vm351, %v921
    %927 = vst.msk [vmem:[#allocation5 + $0xa] sm:$0x1] %vm351, %v923
    %s928 = scalar_lea.vmem %s0, 32
    %v929 = vld [vmem:[%s928] sm:$0xff]
    %v930 = vld [vmem:[#allocation2] sm:$0xff]
    %v931 = vld [vmem:[#allocation2 + $0x8] sm:$0xff]
    %v932 = vld [vmem:[#allocation2 + $0x10] sm:$0xff]
    %v933 = vld [vmem:[#allocation2 + $0x18] sm:$0xff]
    %v934 = vld [vmem:[#allocation2 + $0x20] sm:$0xff]
    %v935 = vld [vmem:[#allocation2 + $0x28] sm:$0xff]
    %v936 = vld [vmem:[#allocation2 + $0x30] sm:$0xff]
    %v937 = vld [vmem:[#allocation2 + $0x38] sm:$0xff]
    %v938 = vld [vmem:[#allocation2 + $0x40] sm:$0xff]
    %v939 = vld [vmem:[#allocation2 + $0x48] sm:$0xff]
    %v940 = vld [vmem:[#allocation2 + $0x50] sm:$0xff]
    %v941 = vld [vmem:[#allocation2 + $0x58] sm:$0xff]
    %v942 = vld [vmem:[#allocation2 + $0x60] sm:$0xff]
    %v943 = vld [vmem:[#allocation2 + $0x68] sm:$0xff]
    %v944 = vld [vmem:[#allocation2 + $0x70] sm:$0xff]
    %v945 = vld [vmem:[#allocation2 + $0x78] sm:$0xff]
    %v946 = vld [vmem:[#allocation2 + $0x80] sm:$0xff]
    %v947 = vld [vmem:[#allocation2 + $0x88] sm:$0xff]
    %v948 = vld [vmem:[#allocation2 + $0x90] sm:$0xff]
    %v949 = vld [vmem:[#allocation2 + $0x98] sm:$0xff]
    %v950 = vld [vmem:[#allocation2 + $0xa0] sm:$0xff]
    %v951 = vld [vmem:[#allocation2 + $0xa8] sm:$0xff]
    %v952 = vld [vmem:[#allocation2 + $0xb0] sm:$0xff]
    %v953 = vld [vmem:[#allocation2 + $0xb8] sm:$0xff]
    %v954 = vld [vmem:[#allocation2 + $0xc0] sm:$0xff]
    %v955 = vld [vmem:[#allocation2 + $0xc8] sm:$0xff]
    %v956 = vld [vmem:[#allocation2 + $0xd0] sm:$0xff]
    %v957 = vld [vmem:[#allocation2 + $0xd8] sm:$0xff]
    %v958 = vld [vmem:[#allocation2 + $0xe0] sm:$0xff]
    %v959 = vld [vmem:[#allocation2 + $0xe8] sm:$0xff]
    %v960 = vld [vmem:[#allocation2 + $0xf0] sm:$0xff]
    %v961 = vld [vmem:[#allocation2 + $0xf8] sm:$0xff]
    %v962 = vld [vmem:[#allocation2 + $0x100] sm:$0xff]
    %v963 = vld [vmem:[#allocation2 + $0x108] sm:$0xff]
    %v964 = vld [vmem:[#allocation2 + $0x110] sm:$0xff]
    %v965 = vld [vmem:[#allocation2 + $0x118] sm:$0xff]
    %v966 = vld [vmem:[#allocation2 + $0x120] sm:$0xff]
    %v967 = vld [vmem:[#allocation2 + $0x128] sm:$0xff]
    %v968 = vld [vmem:[#allocation2 + $0x130] sm:$0xff]
    %v969 = vld [vmem:[#allocation2 + $0x138] sm:$0xff]
    %v970 = vld [vmem:[#allocation2 + $0x140] sm:$0xff]
    %v971 = vld [vmem:[#allocation2 + $0x148] sm:$0xff]
    %v972 = vld [vmem:[#allocation2 + $0x150] sm:$0xff]
    %v973 = vld [vmem:[#allocation2 + $0x158] sm:$0xff]
    %v974 = vld [vmem:[#allocation2 + $0x160] sm:$0xff]
    %v975 = vld [vmem:[#allocation2 + $0x168] sm:$0xff]
    %v976 = vld [vmem:[#allocation2 + $0x170] sm:$0xff]
    %v977 = vld [vmem:[#allocation2 + $0x178] sm:$0xff]
    %v978 = vld [vmem:[#allocation2 + $0x180] sm:$0xff]
    %v979 = vld [vmem:[#allocation2 + $0x188] sm:$0xff]
    %v980 = vld [vmem:[#allocation2 + $0x190] sm:$0xff]
    %v981 = vld [vmem:[#allocation2 + $0x198] sm:$0xff]
    %v982 = vld [vmem:[#allocation2 + $0x1a0] sm:$0xff]
    %v983 = vld [vmem:[#allocation2 + $0x1a8] sm:$0xff]
    %v984 = vld [vmem:[#allocation2 + $0x1b0] sm:$0xff]
    %v985 = vld [vmem:[#allocation2 + $0x1b8] sm:$0xff]
    %v986 = vld [vmem:[#allocation2 + $0x1c0] sm:$0xff]
    %v987 = vld [vmem:[#allocation2 + $0x1c8] sm:$0xff]
    %v988 = vld [vmem:[#allocation2 + $0x1d0] sm:$0xff]
    %v989 = vld [vmem:[#allocation2 + $0x1d8] sm:$0xff]
    %v990 = vld [vmem:[#allocation2 + $0x1e0] sm:$0xff]
    %v991 = vld [vmem:[#allocation2 + $0x1e8] sm:$0xff]
    %v992 = vld [vmem:[#allocation2 + $0x1f0] sm:$0xff]
    %v993 = vld [vmem:[#allocation2 + $0x1f8] sm:$0xff]
    %994 = vmatprep.subr.mxu0 %v931
    %995 = vmatpush1.msra.mxu0 %v930
    %996 = vmatprep.subr.mxu0 %v935
    %997 = vmatpush1.msra.mxu0 %v934
    %998 = vmatprep.subr.mxu0 %v939
    %999 = vmatpush1.msra.mxu0 %v938
    %1000 = vmatprep.subr.mxu0 %v943
    %1001 = vmatpush1.msra.mxu0 %v942
    %1002 = vmatprep.subr.mxu0 %v947
    %1003 = vmatpush1.msra.mxu0 %v946
    %1004 = vmatprep.subr.mxu0 %v951
    %1005 = vmatpush1.msra.mxu0 %v950
    %1006 = vmatprep.subr.mxu0 %v955
    %1007 = vmatpush1.msra.mxu0 %v954
    %1008 = vmatprep.subr.mxu0 %v959
    %1009 = vmatpush1.msra.mxu0 %v958
    %1010 = vmatprep.subr.mxu0 %v963
    %1011 = vmatpush1.msra.mxu0 %v962
    %1012 = vmatprep.subr.mxu0 %v967
    %1013 = vmatpush1.msra.mxu0 %v966
    %1014 = vmatprep.subr.mxu0 %v971
    %1015 = vmatpush1.msra.mxu0 %v970
    %1016 = vmatprep.subr.mxu0 %v975
    %1017 = vmatpush1.msra.mxu0 %v974
    %1018 = vmatprep.subr.mxu0 %v979
    %1019 = vmatpush1.msra.mxu0 %v978
    %1020 = vmatprep.subr.mxu0 %v983
    %1021 = vmatpush1.msra.mxu0 %v982
    %1022 = vmatprep.subr.mxu0 %v987
    %1023 = vmatpush1.msra.mxu0 %v986
    %1024 = vmatprep.subr.mxu0 %v991
    %1025 = vmatpush1.msra.mxu0 %v990
    %1026 = vmatprep.subr.mxu0 0.0
    %1027 = vmatpush1.msra.mxu0 0.0
    %1028 = vmatprep.subr.mxu0 0.0
    %1029 = vmatpush1.msra.mxu0 0.0
    %1030 = vmatprep.subr.mxu0 0.0
    %1031 = vmatpush1.msra.mxu0 0.0
    %1032 = vmatprep.subr.mxu0 0.0
    %1033 = vmatpush1.msra.mxu0 0.0
    %1034 = vmatprep.subr.mxu0 0.0
    %1035 = vmatpush1.msra.mxu0 0.0
    %1036 = vmatprep.subr.mxu0 0.0
    %1037 = vmatpush1.msra.mxu0 0.0
    %1038 = vmatprep.subr.mxu0 0.0
    %1039 = vmatpush1.msra.mxu0 0.0
    %1040 = vmatprep.subr.mxu0 0.0
    %1041 = vmatpush1.msra.mxu0 0.0
    %1042 = vmatprep.subr.mxu0 0.0
    %1043 = vmatpush1.msra.mxu0 0.0
    %1044 = vmatprep.subr.mxu0 0.0
    %1045 = vmatpush1.msra.mxu0 0.0
    %1046 = vmatprep.subr.mxu0 0.0
    %1047 = vmatpush1.msra.mxu0 0.0
    %1048 = vmatprep.subr.mxu0 0.0
    %1049 = vmatpush1.msra.mxu0 0.0
    %1050 = vmatprep.subr.mxu0 0.0
    %1051 = vmatpush1.msra.mxu0 0.0
    %1052 = vmatprep.subr.mxu0 0.0
    %1053 = vmatpush1.msra.mxu0 0.0
    %1054 = vmatprep.subr.mxu0 0.0
    %1055 = vmatpush1.msra.mxu0 0.0
    %1056 = vmatprep.subr.mxu0 0.0
    %1057 = vmatpush1.msra.mxu0 0.0
    %1058 = vmatprep.mubr.f32.mxu0 0.0
    %1059 = vmatmul.mubr.f32.gmra.mrb[0].mxu0 %v902
    %v1060 = vpop.f32.mrb[0].mxu0
    %v1061 = vadd.f32 0.0, %v1060
    %v1062 = vpop.f32.mrb[0].mxu0
    %v1063 = vadd.f32 0.0, %v1062
    %1064 = vdwg.mxu0
    %1065 = vmatprep.subr.mxu0 %v933
    %1066 = vmatpush1.msra.mxu0 %v932
    %1067 = vmatprep.subr.mxu0 %v937
    %1068 = vmatpush1.msra.mxu0 %v936
    %1069 = vmatprep.subr.mxu0 %v941
    %1070 = vmatpush1.msra.mxu0 %v940
    %1071 = vmatprep.subr.mxu0 %v945
    %1072 = vmatpush1.msra.mxu0 %v944
    %1073 = vmatprep.subr.mxu0 %v949
    %1074 = vmatpush1.msra.mxu0 %v948
    %1075 = vmatprep.subr.mxu0 %v953
    %1076 = vmatpush1.msra.mxu0 %v952
    %1077 = vmatprep.subr.mxu0 %v957
    %1078 = vmatpush1.msra.mxu0 %v956
    %1079 = vmatprep.subr.mxu0 %v961
    %1080 = vmatpush1.msra.mxu0 %v960
    %1081 = vmatprep.subr.mxu0 %v965
    %1082 = vmatpush1.msra.mxu0 %v964
    %1083 = vmatprep.subr.mxu0 %v969
    %1084 = vmatpush1.msra.mxu0 %v968
    %1085 = vmatprep.subr.mxu0 %v973
    %1086 = vmatpush1.msra.mxu0 %v972
    %1087 = vmatprep.subr.mxu0 %v977
    %1088 = vmatpush1.msra.mxu0 %v976
    %1089 = vmatprep.subr.mxu0 %v981
    %1090 = vmatpush1.msra.mxu0 %v980
    %1091 = vmatprep.subr.mxu0 %v985
    %1092 = vmatpush1.msra.mxu0 %v984
    %1093 = vmatprep.subr.mxu0 %v989
    %1094 = vmatpush1.msra.mxu0 %v988
    %1095 = vmatprep.subr.mxu0 %v993
    %1096 = vmatpush1.msra.mxu0 %v992
    %1097 = vmatprep.subr.mxu0 0.0
    %1098 = vmatpush1.msra.mxu0 0.0
    %1099 = vmatprep.subr.mxu0 0.0
    %1100 = vmatpush1.msra.mxu0 0.0
    %1101 = vmatprep.subr.mxu0 0.0
    %1102 = vmatpush1.msra.mxu0 0.0
    %1103 = vmatprep.subr.mxu0 0.0
    %1104 = vmatpush1.msra.mxu0 0.0
    %1105 = vmatprep.subr.mxu0 0.0
    %1106 = vmatpush1.msra.mxu0 0.0
    %1107 = vmatprep.subr.mxu0 0.0
    %1108 = vmatpush1.msra.mxu0 0.0
    %1109 = vmatprep.subr.mxu0 0.0
    %1110 = vmatpush1.msra.mxu0 0.0
    %1111 = vmatprep.subr.mxu0 0.0
    %1112 = vmatpush1.msra.mxu0 0.0
    %1113 = vmatprep.subr.mxu0 0.0
    %1114 = vmatpush1.msra.mxu0 0.0
    %1115 = vmatprep.subr.mxu0 0.0
    %1116 = vmatpush1.msra.mxu0 0.0
    %1117 = vmatprep.subr.mxu0 0.0
    %1118 = vmatpush1.msra.mxu0 0.0
    %1119 = vmatprep.subr.mxu0 0.0
    %1120 = vmatpush1.msra.mxu0 0.0
    %1121 = vmatprep.subr.mxu0 0.0
    %1122 = vmatpush1.msra.mxu0 0.0
    %1123 = vmatprep.subr.mxu0 0.0
    %1124 = vmatpush1.msra.mxu0 0.0
    %1125 = vmatprep.subr.mxu0 0.0
    %1126 = vmatpush1.msra.mxu0 0.0
    %1127 = vmatprep.subr.mxu0 0.0
    %1128 = vmatpush1.msra.mxu0 0.0
    %1129 = vmatprep.mubr.f32.mxu0 0.0
    %1130 = vmatmul.mubr.f32.gmra.mrb[0].mxu0 %v902
    %v1131 = vpop.f32.mrb[0].mxu0
    %v1132 = vadd.f32 0.0, %v1131
    %v1133 = vpop.f32.mrb[0].mxu0
    %v1134 = vadd.f32 0.0, %v1133
    %1135 = vdwg.mxu0
    %v1140 = vcombine.low %v1061, %v1063
    %v1141 = vcombine.low %v1132, %v1134
    %v1143 = vunpack.c.l.s4 1983009808
    %v1144 = vunpack.c.0.s8 %v1143
    %v1145 = vlaneseq
    %v1146 = vshrl.u32 %v1145, 7
    %v1147 = vsub.s32 %v1144, %v1146
    %v1148 = vrot.slane %v1140, %v1147
    %v1150 = vunpack.c.l.s4 1983009808
    %v1151 = vunpack.c.0.s8 %v1150
    %v1152 = vlaneseq
    %v1153 = vshrl.u32 %v1152, 7
    %v1154 = vsub.s32 %v1151, %v1153
    %v1155 = vrot.slane %v1141, %v1154
    %v1156 = vcombine.low %v1148, %v1155
    %v1158 = vadd.f32 %v929, %v1156
    %v1159 = vxor.u32 %v1158, 2147483648
    %v1160 = vmul.f32 %v1159, 1.442695
    %v1161 = vpow.pop %v1160
    %v1162 = vadd.f32 %v1161, 1.0
    %v1163 = vrcp.pop %v1162
    %v1164 = vmul.f32 1.0, %v1163
    %v1166 = vrot.slane %v1158, 2
    %v1168 = vxor.u32 %v1166, 2147483648
    %v1169 = vmul.f32 %v1168, 1.442695
    %v1170 = vpow.pop %v1169
    %v1171 = vadd.f32 %v1170, 1.0
    %v1172 = vrcp.pop %v1171
    %v1173 = vmul.f32 1.0, %v1172
    %v1174 = vrot.slane %v1158, 4
    %v1176 = vtanh.pop %v1174
    %v1177 = vrot.slane %v1158, 6
    %v1179 = vxor.u32 %v1177, 2147483648
    %v1180 = vmul.f32 %v1179, 1.442695
    %v1181 = vpow.pop %v1180
    %v1182 = vadd.f32 %v1181, 1.0
    %v1183 = vrcp.pop %v1182
    %v1184 = vmul.f32 1.0, %v1183
    %v1185 = vmul.f32 %v1173, %v900
    %v1186 = vmul.f32 %v1164, %v1176
    %v1187 = vadd.f32 %v1185, %v1186
    %v1188 = vtanh.pop %v1187
    %v1189 = vmul.f32 %v1184, %v1188
    %v1192 = vunpack.c.l.s4 1966171168
    %v1193 = vunpack.c.0.s8 %v1192
    %v1194 = vlaneseq
    %v1195 = vshrl.u32 %v1194, 7
    %v1196 = vsub.s32 %v1193, %v1195
    %v1197 = vrot.slane %v1189, %v1196
    %v1198 = vcombine.high %v1197, %v1197
    %v1199 = vlaneseq
    %v1200 = vshrl.u32 %v1199, 7
    %v1201 = vsub.s32 0, %v1200
    %v1202 = vrot.slane %v1197, %v1201
    %v1203 = vlaneseq
    %v1204 = vshrl.u32 %v1203, 7
    %v1205 = vsub.s32 0, %v1204
    %v1206 = vrot.slane %v1198, %v1205
    %1207 = vrot.lane.b32.xlu0 %v1202, 64
    %v1208 = vpop.permute.xlu0 %1207
    %1209 = vrot.lane.b32.xlu0 %v1206, 64
    %v1210 = vpop.permute.xlu0 %1209
    %1213 = vst.msk [vmem:[#allocation5 + $0x3] sm:$0x1] %vm351, %v1208
    %1214 = vst.msk [vmem:[#allocation5 + $0xb] sm:$0x1] %vm351, %v1210
    %s1215 = scalar_lea.vmem %s0, 40
    %v1216 = vld [vmem:[%s1215] sm:$0xff]
    %v1217 = vld [vmem:[#allocation2] sm:$0xff]
    %v1218 = vld [vmem:[#allocation2 + $0x8] sm:$0xff]
    %v1219 = vld [vmem:[#allocation2 + $0x10] sm:$0xff]
    %v1220 = vld [vmem:[#allocation2 + $0x18] sm:$0xff]
    %v1221 = vld [vmem:[#allocation2 + $0x20] sm:$0xff]
    %v1222 = vld [vmem:[#allocation2 + $0x28] sm:$0xff]
    %v1223 = vld [vmem:[#allocation2 + $0x30] sm:$0xff]
    %v1224 = vld [vmem:[#allocation2 + $0x38] sm:$0xff]
    %v1225 = vld [vmem:[#allocation2 + $0x40] sm:$0xff]
    %v1226 = vld [vmem:[#allocation2 + $0x48] sm:$0xff]
    %v1227 = vld [vmem:[#allocation2 + $0x50] sm:$0xff]
    %v1228 = vld [vmem:[#allocation2 + $0x58] sm:$0xff]
    %v1229 = vld [vmem:[#allocation2 + $0x60] sm:$0xff]
    %v1230 = vld [vmem:[#allocation2 + $0x68] sm:$0xff]
    %v1231 = vld [vmem:[#allocation2 + $0x70] sm:$0xff]
    %v1232 = vld [vmem:[#allocation2 + $0x78] sm:$0xff]
    %v1233 = vld [vmem:[#allocation2 + $0x80] sm:$0xff]
    %v1234 = vld [vmem:[#allocation2 + $0x88] sm:$0xff]
    %v1235 = vld [vmem:[#allocation2 + $0x90] sm:$0xff]
    %v1236 = vld [vmem:[#allocation2 + $0x98] sm:$0xff]
    %v1237 = vld [vmem:[#allocation2 + $0xa0] sm:$0xff]
    %v1238 = vld [vmem:[#allocation2 + $0xa8] sm:$0xff]
    %v1239 = vld [vmem:[#allocation2 + $0xb0] sm:$0xff]
    %v1240 = vld [vmem:[#allocation2 + $0xb8] sm:$0xff]
    %v1241 = vld [vmem:[#allocation2 + $0xc0] sm:$0xff]
    %v1242 = vld [vmem:[#allocation2 + $0xc8] sm:$0xff]
    %v1243 = vld [vmem:[#allocation2 + $0xd0] sm:$0xff]
    %v1244 = vld [vmem:[#allocation2 + $0xd8] sm:$0xff]
    %v1245 = vld [vmem:[#allocation2 + $0xe0] sm:$0xff]
    %v1246 = vld [vmem:[#allocation2 + $0xe8] sm:$0xff]
    %v1247 = vld [vmem:[#allocation2 + $0xf0] sm:$0xff]
    %v1248 = vld [vmem:[#allocation2 + $0xf8] sm:$0xff]
    %v1249 = vld [vmem:[#allocation2 + $0x100] sm:$0xff]
    %v1250 = vld [vmem:[#allocation2 + $0x108] sm:$0xff]
    %v1251 = vld [vmem:[#allocation2 + $0x110] sm:$0xff]
    %v1252 = vld [vmem:[#allocation2 + $0x118] sm:$0xff]
    %v1253 = vld [vmem:[#allocation2 + $0x120] sm:$0xff]
    %v1254 = vld [vmem:[#allocation2 + $0x128] sm:$0xff]
    %v1255 = vld [vmem:[#allocation2 + $0x130] sm:$0xff]
    %v1256 = vld [vmem:[#allocation2 + $0x138] sm:$0xff]
    %v1257 = vld [vmem:[#allocation2 + $0x140] sm:$0xff]
    %v1258 = vld [vmem:[#allocation2 + $0x148] sm:$0xff]
    %v1259 = vld [vmem:[#allocation2 + $0x150] sm:$0xff]
    %v1260 = vld [vmem:[#allocation2 + $0x158] sm:$0xff]
    %v1261 = vld [vmem:[#allocation2 + $0x160] sm:$0xff]
    %v1262 = vld [vmem:[#allocation2 + $0x168] sm:$0xff]
    %v1263 = vld [vmem:[#allocation2 + $0x170] sm:$0xff]
    %v1264 = vld [vmem:[#allocation2 + $0x178] sm:$0xff]
    %v1265 = vld [vmem:[#allocation2 + $0x180] sm:$0xff]
    %v1266 = vld [vmem:[#allocation2 + $0x188] sm:$0xff]
    %v1267 = vld [vmem:[#allocation2 + $0x190] sm:$0xff]
    %v1268 = vld [vmem:[#allocation2 + $0x198] sm:$0xff]
    %v1269 = vld [vmem:[#allocation2 + $0x1a0] sm:$0xff]
    %v1270 = vld [vmem:[#allocation2 + $0x1a8] sm:$0xff]
    %v1271 = vld [vmem:[#allocation2 + $0x1b0] sm:$0xff]
    %v1272 = vld [vmem:[#allocation2 + $0x1b8] sm:$0xff]
    %v1273 = vld [vmem:[#allocation2 + $0x1c0] sm:$0xff]
    %v1274 = vld [vmem:[#allocation2 + $0x1c8] sm:$0xff]
    %v1275 = vld [vmem:[#allocation2 + $0x1d0] sm:$0xff]
    %v1276 = vld [vmem:[#allocation2 + $0x1d8] sm:$0xff]
    %v1277 = vld [vmem:[#allocation2 + $0x1e0] sm:$0xff]
    %v1278 = vld [vmem:[#allocation2 + $0x1e8] sm:$0xff]
    %v1279 = vld [vmem:[#allocation2 + $0x1f0] sm:$0xff]
    %v1280 = vld [vmem:[#allocation2 + $0x1f8] sm:$0xff]
    %1281 = vmatprep.subr.mxu0 %v1218
    %1282 = vmatpush1.msra.mxu0 %v1217
    %1283 = vmatprep.subr.mxu0 %v1222
    %1284 = vmatpush1.msra.mxu0 %v1221
    %1285 = vmatprep.subr.mxu0 %v1226
    %1286 = vmatpush1.msra.mxu0 %v1225
    %1287 = vmatprep.subr.mxu0 %v1230
    %1288 = vmatpush1.msra.mxu0 %v1229
    %1289 = vmatprep.subr.mxu0 %v1234
    %1290 = vmatpush1.msra.mxu0 %v1233
    %1291 = vmatprep.subr.mxu0 %v1238
    %1292 = vmatpush1.msra.mxu0 %v1237
    %1293 = vmatprep.subr.mxu0 %v1242
    %1294 = vmatpush1.msra.mxu0 %v1241
    %1295 = vmatprep.subr.mxu0 %v1246
    %1296 = vmatpush1.msra.mxu0 %v1245
    %1297 = vmatprep.subr.mxu0 %v1250
    %1298 = vmatpush1.msra.mxu0 %v1249
    %1299 = vmatprep.subr.mxu0 %v1254
    %1300 = vmatpush1.msra.mxu0 %v1253
    %1301 = vmatprep.subr.mxu0 %v1258
    %1302 = vmatpush1.msra.mxu0 %v1257
    %1303 = vmatprep.subr.mxu0 %v1262
    %1304 = vmatpush1.msra.mxu0 %v1261
    %1305 = vmatprep.subr.mxu0 %v1266
    %1306 = vmatpush1.msra.mxu0 %v1265
    %1307 = vmatprep.subr.mxu0 %v1270
    %1308 = vmatpush1.msra.mxu0 %v1269
    %1309 = vmatprep.subr.mxu0 %v1274
    %1310 = vmatpush1.msra.mxu0 %v1273
    %1311 = vmatprep.subr.mxu0 %v1278
    %1312 = vmatpush1.msra.mxu0 %v1277
    %1313 = vmatprep.subr.mxu0 0.0
    %1314 = vmatpush1.msra.mxu0 0.0
    %1315 = vmatprep.subr.mxu0 0.0
    %1316 = vmatpush1.msra.mxu0 0.0
    %1317 = vmatprep.subr.mxu0 0.0
    %1318 = vmatpush1.msra.mxu0 0.0
    %1319 = vmatprep.subr.mxu0 0.0
    %1320 = vmatpush1.msra.mxu0 0.0
    %1321 = vmatprep.subr.mxu0 0.0
    %1322 = vmatpush1.msra.mxu0 0.0
    %1323 = vmatprep.subr.mxu0 0.0
    %1324 = vmatpush1.msra.mxu0 0.0
    %1325 = vmatprep.subr.mxu0 0.0
    %1326 = vmatpush1.msra.mxu0 0.0
    %1327 = vmatprep.subr.mxu0 0.0
    %1328 = vmatpush1.msra.mxu0 0.0
    %1329 = vmatprep.subr.mxu0 0.0
    %1330 = vmatpush1.msra.mxu0 0.0
    %1331 = vmatprep.subr.mxu0 0.0
    %1332 = vmatpush1.msra.mxu0 0.0
    %1333 = vmatprep.subr.mxu0 0.0
    %1334 = vmatpush1.msra.mxu0 0.0
    %1335 = vmatprep.subr.mxu0 0.0
    %1336 = vmatpush1.msra.mxu0 0.0
    %1337 = vmatprep.subr.mxu0 0.0
    %1338 = vmatpush1.msra.mxu0 0.0
    %1339 = vmatprep.subr.mxu0 0.0
    %1340 = vmatpush1.msra.mxu0 0.0
    %1341 = vmatprep.subr.mxu0 0.0
    %1342 = vmatpush1.msra.mxu0 0.0
    %1343 = vmatprep.subr.mxu0 0.0
    %1344 = vmatpush1.msra.mxu0 0.0
    %1345 = vmatprep.mubr.f32.mxu0 0.0
    %1346 = vmatmul.mubr.f32.gmra.mrb[0].mxu0 %v1189
    %v1347 = vpop.f32.mrb[0].mxu0
    %v1348 = vadd.f32 0.0, %v1347
    %v1349 = vpop.f32.mrb[0].mxu0
    %v1350 = vadd.f32 0.0, %v1349
    %1351 = vdwg.mxu0
    %1352 = vmatprep.subr.mxu0 %v1220
    %1353 = vmatpush1.msra.mxu0 %v1219
    %1354 = vmatprep.subr.mxu0 %v1224
    %1355 = vmatpush1.msra.mxu0 %v1223
    %1356 = vmatprep.subr.mxu0 %v1228
    %1357 = vmatpush1.msra.mxu0 %v1227
    %1358 = vmatprep.subr.mxu0 %v1232
    %1359 = vmatpush1.msra.mxu0 %v1231
    %1360 = vmatprep.subr.mxu0 %v1236
    %1361 = vmatpush1.msra.mxu0 %v1235
    %1362 = vmatprep.subr.mxu0 %v1240
    %1363 = vmatpush1.msra.mxu0 %v1239
    %1364 = vmatprep.subr.mxu0 %v1244
    %1365 = vmatpush1.msra.mxu0 %v1243
    %1366 = vmatprep.subr.mxu0 %v1248
    %1367 = vmatpush1.msra.mxu0 %v1247
    %1368 = vmatprep.subr.mxu0 %v1252
    %1369 = vmatpush1.msra.mxu0 %v1251
    %1370 = vmatprep.subr.mxu0 %v1256
    %1371 = vmatpush1.msra.mxu0 %v1255
    %1372 = vmatprep.subr.mxu0 %v1260
    %1373 = vmatpush1.msra.mxu0 %v1259
    %1374 = vmatprep.subr.mxu0 %v1264
    %1375 = vmatpush1.msra.mxu0 %v1263
    %1376 = vmatprep.subr.mxu0 %v1268
    %1377 = vmatpush1.msra.mxu0 %v1267
    %1378 = vmatprep.subr.mxu0 %v1272
    %1379 = vmatpush1.msra.mxu0 %v1271
    %1380 = vmatprep.subr.mxu0 %v1276
    %1381 = vmatpush1.msra.mxu0 %v1275
    %1382 = vmatprep.subr.mxu0 %v1280
    %1383 = vmatpush1.msra.mxu0 %v1279
    %1384 = vmatprep.subr.mxu0 0.0
    %1385 = vmatpush1.msra.mxu0 0.0
    %1386 = vmatprep.subr.mxu0 0.0
    %1387 = vmatpush1.msra.mxu0 0.0
    %1388 = vmatprep.subr.mxu0 0.0
    %1389 = vmatpush1.msra.mxu0 0.0
    %1390 = vmatprep.subr.mxu0 0.0
    %1391 = vmatpush1.msra.mxu0 0.0
    %1392 = vmatprep.subr.mxu0 0.0
    %1393 = vmatpush1.msra.mxu0 0.0
    %1394 = vmatprep.subr.mxu0 0.0
    %1395 = vmatpush1.msra.mxu0 0.0
    %1396 = vmatprep.subr.mxu0 0.0
    %1397 = vmatpush1.msra.mxu0 0.0
    %1398 = vmatprep.subr.mxu0 0.0
    %1399 = vmatpush1.msra.mxu0 0.0
    %1400 = vmatprep.subr.mxu0 0.0
    %1401 = vmatpush1.msra.mxu0 0.0
    %1402 = vmatprep.subr.mxu0 0.0
    %1403 = vmatpush1.msra.mxu0 0.0
    %1404 = vmatprep.subr.mxu0 0.0
    %1405 = vmatpush1.msra.mxu0 0.0
    %1406 = vmatprep.subr.mxu0 0.0
    %1407 = vmatpush1.msra.mxu0 0.0
    %1408 = vmatprep.subr.mxu0 0.0
    %1409 = vmatpush1.msra.mxu0 0.0
    %1410 = vmatprep.subr.mxu0 0.0
    %1411 = vmatpush1.msra.mxu0 0.0
    %1412 = vmatprep.subr.mxu0 0.0
    %1413 = vmatpush1.msra.mxu0 0.0
    %1414 = vmatprep.subr.mxu0 0.0
    %1415 = vmatpush1.msra.mxu0 0.0
    %1416 = vmatprep.mubr.f32.mxu0 0.0
    %1417 = vmatmul.mubr.f32.gmra.mrb[0].mxu0 %v1189
    %v1418 = vpop.f32.mrb[0].mxu0
    %v1419 = vadd.f32 0.0, %v1418
    %v1420 = vpop.f32.mrb[0].mxu0
    %v1421 = vadd.f32 0.0, %v1420
    %1422 = vdwg.mxu0
    %v1427 = vcombine.low %v1348, %v1350
    %v1428 = vcombine.low %v1419, %v1421
    %v1430 = vunpack.c.l.s4 1983009808
    %v1431 = vunpack.c.0.s8 %v1430
    %v1432 = vlaneseq
    %v1433 = vshrl.u32 %v1432, 7
    %v1434 = vsub.s32 %v1431, %v1433
    %v1435 = vrot.slane %v1427, %v1434
    %v1437 = vunpack.c.l.s4 1983009808
    %v1438 = vunpack.c.0.s8 %v1437
    %v1439 = vlaneseq
    %v1440 = vshrl.u32 %v1439, 7
    %v1441 = vsub.s32 %v1438, %v1440
    %v1442 = vrot.slane %v1428, %v1441
    %v1443 = vcombine.low %v1435, %v1442
    %v1445 = vadd.f32 %v1216, %v1443
    %v1446 = vxor.u32 %v1445, 2147483648
    %v1447 = vmul.f32 %v1446, 1.442695
    %v1448 = vpow.pop %v1447
    %v1449 = vadd.f32 %v1448, 1.0
    %v1450 = vrcp.pop %v1449
    %v1451 = vmul.f32 1.0, %v1450
    %v1453 = vrot.slane %v1445, 2
    %v1455 = vxor.u32 %v1453, 2147483648
    %v1456 = vmul.f32 %v1455, 1.442695
    %v1457 = vpow.pop %v1456
    %v1458 = vadd.f32 %v1457, 1.0
    %v1459 = vrcp.pop %v1458
    %v1460 = vmul.f32 1.0, %v1459
    %v1461 = vrot.slane %v1445, 4
    %v1463 = vtanh.pop %v1461
    %v1464 = vrot.slane %v1445, 6
    %v1466 = vxor.u32 %v1464, 2147483648
    %v1467 = vmul.f32 %v1466, 1.442695
    %v1468 = vpow.pop %v1467
    %v1469 = vadd.f32 %v1468, 1.0
    %v1470 = vrcp.pop %v1469
    %v1471 = vmul.f32 1.0, %v1470
    %v1472 = vmul.f32 %v1460, %v1187
    %v1473 = vmul.f32 %v1451, %v1463
    %v1474 = vadd.f32 %v1472, %v1473
    %v1475 = vtanh.pop %v1474
    %v1476 = vmul.f32 %v1471, %v1475
    %v1479 = vunpack.c.l.s4 1966171168
    %v1480 = vunpack.c.0.s8 %v1479
    %v1481 = vlaneseq
    %v1482 = vshrl.u32 %v1481, 7
    %v1483 = vsub.s32 %v1480, %v1482
    %v1484 = vrot.slane %v1476, %v1483
    %v1485 = vcombine.high %v1484, %v1484
    %v1486 = vlaneseq
    %v1487 = vshrl.u32 %v1486, 7
    %v1488 = vsub.s32 0, %v1487
    %v1489 = vrot.slane %v1484, %v1488
    %v1490 = vlaneseq
    %v1491 = vshrl.u32 %v1490, 7
    %v1492 = vsub.s32 0, %v1491
    %v1493 = vrot.slane %v1485, %v1492
    %1494 = vrot.lane.b32.xlu0 %v1489, 64
    %v1495 = vpop.permute.xlu0 %1494
    %1496 = vrot.lane.b32.xlu0 %v1493, 64
    %v1497 = vpop.permute.xlu0 %1496
    %1500 = vst.msk [vmem:[#allocation5 + $0x4] sm:$0x1] %vm351, %v1495
    %1501 = vst.msk [vmem:[#allocation5 + $0xc] sm:$0x1] %vm351, %v1497
    %s1502 = scalar_lea.vmem %s0, 48
    %v1503 = vld [vmem:[%s1502] sm:$0xff]
    %v1504 = vld [vmem:[#allocation2] sm:$0xff]
    %v1505 = vld [vmem:[#allocation2 + $0x8] sm:$0xff]
    %v1506 = vld [vmem:[#allocation2 + $0x10] sm:$0xff]
    %v1507 = vld [vmem:[#allocation2 + $0x18] sm:$0xff]
    %v1508 = vld [vmem:[#allocation2 + $0x20] sm:$0xff]
    %v1509 = vld [vmem:[#allocation2 + $0x28] sm:$0xff]
    %v1510 = vld [vmem:[#allocation2 + $0x30] sm:$0xff]
    %v1511 = vld [vmem:[#allocation2 + $0x38] sm:$0xff]
    %v1512 = vld [vmem:[#allocation2 + $0x40] sm:$0xff]
    %v1513 = vld [vmem:[#allocation2 + $0x48] sm:$0xff]
    %v1514 = vld [vmem:[#allocation2 + $0x50] sm:$0xff]
    %v1515 = vld [vmem:[#allocation2 + $0x58] sm:$0xff]
    %v1516 = vld [vmem:[#allocation2 + $0x60] sm:$0xff]
    %v1517 = vld [vmem:[#allocation2 + $0x68] sm:$0xff]
    %v1518 = vld [vmem:[#allocation2 + $0x70] sm:$0xff]
    %v1519 = vld [vmem:[#allocation2 + $0x78] sm:$0xff]
    %v1520 = vld [vmem:[#allocation2 + $0x80] sm:$0xff]
    %v1521 = vld [vmem:[#allocation2 + $0x88] sm:$0xff]
    %v1522 = vld [vmem:[#allocation2 + $0x90] sm:$0xff]
    %v1523 = vld [vmem:[#allocation2 + $0x98] sm:$0xff]
    %v1524 = vld [vmem:[#allocation2 + $0xa0] sm:$0xff]
    %v1525 = vld [vmem:[#allocation2 + $0xa8] sm:$0xff]
    %v1526 = vld [vmem:[#allocation2 + $0xb0] sm:$0xff]
    %v1527 = vld [vmem:[#allocation2 + $0xb8] sm:$0xff]
    %v1528 = vld [vmem:[#allocation2 + $0xc0] sm:$0xff]
    %v1529 = vld [vmem:[#allocation2 + $0xc8] sm:$0xff]
    %v1530 = vld [vmem:[#allocation2 + $0xd0] sm:$0xff]
    %v1531 = vld [vmem:[#allocation2 + $0xd8] sm:$0xff]
    %v1532 = vld [vmem:[#allocation2 + $0xe0] sm:$0xff]
    %v1533 = vld [vmem:[#allocation2 + $0xe8] sm:$0xff]
    %v1534 = vld [vmem:[#allocation2 + $0xf0] sm:$0xff]
    %v1535 = vld [vmem:[#allocation2 + $0xf8] sm:$0xff]
    %v1536 = vld [vmem:[#allocation2 + $0x100] sm:$0xff]
    %v1537 = vld [vmem:[#allocation2 + $0x108] sm:$0xff]
    %v1538 = vld [vmem:[#allocation2 + $0x110] sm:$0xff]
    %v1539 = vld [vmem:[#allocation2 + $0x118] sm:$0xff]
    %v1540 = vld [vmem:[#allocation2 + $0x120] sm:$0xff]
    %v1541 = vld [vmem:[#allocation2 + $0x128] sm:$0xff]
    %v1542 = vld [vmem:[#allocation2 + $0x130] sm:$0xff]
    %v1543 = vld [vmem:[#allocation2 + $0x138] sm:$0xff]
    %v1544 = vld [vmem:[#allocation2 + $0x140] sm:$0xff]
    %v1545 = vld [vmem:[#allocation2 + $0x148] sm:$0xff]
    %v1546 = vld [vmem:[#allocation2 + $0x150] sm:$0xff]
    %v1547 = vld [vmem:[#allocation2 + $0x158] sm:$0xff]
    %v1548 = vld [vmem:[#allocation2 + $0x160] sm:$0xff]
    %v1549 = vld [vmem:[#allocation2 + $0x168] sm:$0xff]
    %v1550 = vld [vmem:[#allocation2 + $0x170] sm:$0xff]
    %v1551 = vld [vmem:[#allocation2 + $0x178] sm:$0xff]
    %v1552 = vld [vmem:[#allocation2 + $0x180] sm:$0xff]
    %v1553 = vld [vmem:[#allocation2 + $0x188] sm:$0xff]
    %v1554 = vld [vmem:[#allocation2 + $0x190] sm:$0xff]
    %v1555 = vld [vmem:[#allocation2 + $0x198] sm:$0xff]
    %v1556 = vld [vmem:[#allocation2 + $0x1a0] sm:$0xff]
    %v1557 = vld [vmem:[#allocation2 + $0x1a8] sm:$0xff]
    %v1558 = vld [vmem:[#allocation2 + $0x1b0] sm:$0xff]
    %v1559 = vld [vmem:[#allocation2 + $0x1b8] sm:$0xff]
    %v1560 = vld [vmem:[#allocation2 + $0x1c0] sm:$0xff]
    %v1561 = vld [vmem:[#allocation2 + $0x1c8] sm:$0xff]
    %v1562 = vld [vmem:[#allocation2 + $0x1d0] sm:$0xff]
    %v1563 = vld [vmem:[#allocation2 + $0x1d8] sm:$0xff]
    %v1564 = vld [vmem:[#allocation2 + $0x1e0] sm:$0xff]
    %v1565 = vld [vmem:[#allocation2 + $0x1e8] sm:$0xff]
    %v1566 = vld [vmem:[#allocation2 + $0x1f0] sm:$0xff]
    %v1567 = vld [vmem:[#allocation2 + $0x1f8] sm:$0xff]
    %1568 = vmatprep.subr.mxu0 %v1505
    %1569 = vmatpush1.msra.mxu0 %v1504
    %1570 = vmatprep.subr.mxu0 %v1509
    %1571 = vmatpush1.msra.mxu0 %v1508
    %1572 = vmatprep.subr.mxu0 %v1513
    %1573 = vmatpush1.msra.mxu0 %v1512
    %1574 = vmatprep.subr.mxu0 %v1517
    %1575 = vmatpush1.msra.mxu0 %v1516
    %1576 = vmatprep.subr.mxu0 %v1521
    %1577 = vmatpush1.msra.mxu0 %v1520
    %1578 = vmatprep.subr.mxu0 %v1525
    %1579 = vmatpush1.msra.mxu0 %v1524
    %1580 = vmatprep.subr.mxu0 %v1529
    %1581 = vmatpush1.msra.mxu0 %v1528
    %1582 = vmatprep.subr.mxu0 %v1533
    %1583 = vmatpush1.msra.mxu0 %v1532
    %1584 = vmatprep.subr.mxu0 %v1537
    %1585 = vmatpush1.msra.mxu0 %v1536
    %1586 = vmatprep.subr.mxu0 %v1541
    %1587 = vmatpush1.msra.mxu0 %v1540
    %1588 = vmatprep.subr.mxu0 %v1545
    %1589 = vmatpush1.msra.mxu0 %v1544
    %1590 = vmatprep.subr.mxu0 %v1549
    %1591 = vmatpush1.msra.mxu0 %v1548
    %1592 = vmatprep.subr.mxu0 %v1553
    %1593 = vmatpush1.msra.mxu0 %v1552
    %1594 = vmatprep.subr.mxu0 %v1557
    %1595 = vmatpush1.msra.mxu0 %v1556
    %1596 = vmatprep.subr.mxu0 %v1561
    %1597 = vmatpush1.msra.mxu0 %v1560
    %1598 = vmatprep.subr.mxu0 %v1565
    %1599 = vmatpush1.msra.mxu0 %v1564
    %1600 = vmatprep.subr.mxu0 0.0
    %1601 = vmatpush1.msra.mxu0 0.0
    %1602 = vmatprep.subr.mxu0 0.0
    %1603 = vmatpush1.msra.mxu0 0.0
    %1604 = vmatprep.subr.mxu0 0.0
    %1605 = vmatpush1.msra.mxu0 0.0
    %1606 = vmatprep.subr.mxu0 0.0
    %1607 = vmatpush1.msra.mxu0 0.0
    %1608 = vmatprep.subr.mxu0 0.0
    %1609 = vmatpush1.msra.mxu0 0.0
    %1610 = vmatprep.subr.mxu0 0.0
    %1611 = vmatpush1.msra.mxu0 0.0
    %1612 = vmatprep.subr.mxu0 0.0
    %1613 = vmatpush1.msra.mxu0 0.0
    %1614 = vmatprep.subr.mxu0 0.0
    %1615 = vmatpush1.msra.mxu0 0.0
    %1616 = vmatprep.subr.mxu0 0.0
    %1617 = vmatpush1.msra.mxu0 0.0
    %1618 = vmatprep.subr.mxu0 0.0
    %1619 = vmatpush1.msra.mxu0 0.0
    %1620 = vmatprep.subr.mxu0 0.0
    %1621 = vmatpush1.msra.mxu0 0.0
    %1622 = vmatprep.subr.mxu0 0.0
    %1623 = vmatpush1.msra.mxu0 0.0
    %1624 = vmatprep.subr.mxu0 0.0
    %1625 = vmatpush1.msra.mxu0 0.0
    %1626 = vmatprep.subr.mxu0 0.0
    %1627 = vmatpush1.msra.mxu0 0.0
    %1628 = vmatprep.subr.mxu0 0.0
    %1629 = vmatpush1.msra.mxu0 0.0
    %1630 = vmatprep.subr.mxu0 0.0
    %1631 = vmatpush1.msra.mxu0 0.0
    %1632 = vmatprep.mubr.f32.mxu0 0.0
    %1633 = vmatmul.mubr.f32.gmra.mrb[0].mxu0 %v1476
    %v1634 = vpop.f32.mrb[0].mxu0
    %v1635 = vadd.f32 0.0, %v1634
    %v1636 = vpop.f32.mrb[0].mxu0
    %v1637 = vadd.f32 0.0, %v1636
    %1638 = vdwg.mxu0
    %1639 = vmatprep.subr.mxu0 %v1507
    %1640 = vmatpush1.msra.mxu0 %v1506
    %1641 = vmatprep.subr.mxu0 %v1511
    %1642 = vmatpush1.msra.mxu0 %v1510
    %1643 = vmatprep.subr.mxu0 %v1515
    %1644 = vmatpush1.msra.mxu0 %v1514
    %1645 = vmatprep.subr.mxu0 %v1519
    %1646 = vmatpush1.msra.mxu0 %v1518
    %1647 = vmatprep.subr.mxu0 %v1523
    %1648 = vmatpush1.msra.mxu0 %v1522
    %1649 = vmatprep.subr.mxu0 %v1527
    %1650 = vmatpush1.msra.mxu0 %v1526
    %1651 = vmatprep.subr.mxu0 %v1531
    %1652 = vmatpush1.msra.mxu0 %v1530
    %1653 = vmatprep.subr.mxu0 %v1535
    %1654 = vmatpush1.msra.mxu0 %v1534
    %1655 = vmatprep.subr.mxu0 %v1539
    %1656 = vmatpush1.msra.mxu0 %v1538
    %1657 = vmatprep.subr.mxu0 %v1543
    %1658 = vmatpush1.msra.mxu0 %v1542
    %1659 = vmatprep.subr.mxu0 %v1547
    %1660 = vmatpush1.msra.mxu0 %v1546
    %1661 = vmatprep.subr.mxu0 %v1551
    %1662 = vmatpush1.msra.mxu0 %v1550
    %1663 = vmatprep.subr.mxu0 %v1555
    %1664 = vmatpush1.msra.mxu0 %v1554
    %1665 = vmatprep.subr.mxu0 %v1559
    %1666 = vmatpush1.msra.mxu0 %v1558
    %1667 = vmatprep.subr.mxu0 %v1563
    %1668 = vmatpush1.msra.mxu0 %v1562
    %1669 = vmatprep.subr.mxu0 %v1567
    %1670 = vmatpush1.msra.mxu0 %v1566
    %1671 = vmatprep.subr.mxu0 0.0
    %1672 = vmatpush1.msra.mxu0 0.0
    %1673 = vmatprep.subr.mxu0 0.0
    %1674 = vmatpush1.msra.mxu0 0.0
    %1675 = vmatprep.subr.mxu0 0.0
    %1676 = vmatpush1.msra.mxu0 0.0
    %1677 = vmatprep.subr.mxu0 0.0
    %1678 = vmatpush1.msra.mxu0 0.0
    %1679 = vmatprep.subr.mxu0 0.0
    %1680 = vmatpush1.msra.mxu0 0.0
    %1681 = vmatprep.subr.mxu0 0.0
    %1682 = vmatpush1.msra.mxu0 0.0
    %1683 = vmatprep.subr.mxu0 0.0
    %1684 = vmatpush1.msra.mxu0 0.0
    %1685 = vmatprep.subr.mxu0 0.0
    %1686 = vmatpush1.msra.mxu0 0.0
    %1687 = vmatprep.subr.mxu0 0.0
    %1688 = vmatpush1.msra.mxu0 0.0
    %1689 = vmatprep.subr.mxu0 0.0
    %1690 = vmatpush1.msra.mxu0 0.0
    %1691 = vmatprep.subr.mxu0 0.0
    %1692 = vmatpush1.msra.mxu0 0.0
    %1693 = vmatprep.subr.mxu0 0.0
    %1694 = vmatpush1.msra.mxu0 0.0
    %1695 = vmatprep.subr.mxu0 0.0
    %1696 = vmatpush1.msra.mxu0 0.0
    %1697 = vmatprep.subr.mxu0 0.0
    %1698 = vmatpush1.msra.mxu0 0.0
    %1699 = vmatprep.subr.mxu0 0.0
    %1700 = vmatpush1.msra.mxu0 0.0
    %1701 = vmatprep.subr.mxu0 0.0
    %1702 = vmatpush1.msra.mxu0 0.0
    %1703 = vmatprep.mubr.f32.mxu0 0.0
    %1704 = vmatmul.mubr.f32.gmra.mrb[0].mxu0 %v1476
    %v1705 = vpop.f32.mrb[0].mxu0
    %v1706 = vadd.f32 0.0, %v1705
    %v1707 = vpop.f32.mrb[0].mxu0
    %v1708 = vadd.f32 0.0, %v1707
    %1709 = vdwg.mxu0
    %v1714 = vcombine.low %v1635, %v1637
    %v1715 = vcombine.low %v1706, %v1708
    %v1717 = vunpack.c.l.s4 1983009808
    %v1718 = vunpack.c.0.s8 %v1717
    %v1719 = vlaneseq
    %v1720 = vshrl.u32 %v1719, 7
    %v1721 = vsub.s32 %v1718, %v1720
    %v1722 = vrot.slane %v1714, %v1721
    %v1724 = vunpack.c.l.s4 1983009808
    %v1725 = vunpack.c.0.s8 %v1724
    %v1726 = vlaneseq
    %v1727 = vshrl.u32 %v1726, 7
    %v1728 = vsub.s32 %v1725, %v1727
    %v1729 = vrot.slane %v1715, %v1728
    %v1730 = vcombine.low %v1722, %v1729
    %v1732 = vadd.f32 %v1503, %v1730
    %v1733 = vxor.u32 %v1732, 2147483648
    %v1734 = vmul.f32 %v1733, 1.442695
    %v1735 = vpow.pop %v1734
    %v1736 = vadd.f32 %v1735, 1.0
    %v1737 = vrcp.pop %v1736
    %v1738 = vmul.f32 1.0, %v1737
    %v1740 = vrot.slane %v1732, 2
    %v1742 = vxor.u32 %v1740, 2147483648
    %v1743 = vmul.f32 %v1742, 1.442695
    %v1744 = vpow.pop %v1743
    %v1745 = vadd.f32 %v1744, 1.0
    %v1746 = vrcp.pop %v1745
    %v1747 = vmul.f32 1.0, %v1746
    %v1748 = vrot.slane %v1732, 4
    %v1750 = vtanh.pop %v1748
    %v1751 = vrot.slane %v1732, 6
    %v1753 = vxor.u32 %v1751, 2147483648
    %v1754 = vmul.f32 %v1753, 1.442695
    %v1755 = vpow.pop %v1754
    %v1756 = vadd.f32 %v1755, 1.0
    %v1757 = vrcp.pop %v1756
    %v1758 = vmul.f32 1.0, %v1757
    %v1759 = vmul.f32 %v1747, %v1474
    %v1760 = vmul.f32 %v1738, %v1750
    %v1761 = vadd.f32 %v1759, %v1760
    %v1762 = vtanh.pop %v1761
    %v1763 = vmul.f32 %v1758, %v1762
    %v1766 = vunpack.c.l.s4 1966171168
    %v1767 = vunpack.c.0.s8 %v1766
    %v1768 = vlaneseq
    %v1769 = vshrl.u32 %v1768, 7
    %v1770 = vsub.s32 %v1767, %v1769
    %v1771 = vrot.slane %v1763, %v1770
    %v1772 = vcombine.high %v1771, %v1771
    %v1773 = vlaneseq
    %v1774 = vshrl.u32 %v1773, 7
    %v1775 = vsub.s32 0, %v1774
    %v1776 = vrot.slane %v1771, %v1775
    %v1777 = vlaneseq
    %v1778 = vshrl.u32 %v1777, 7
    %v1779 = vsub.s32 0, %v1778
    %v1780 = vrot.slane %v1772, %v1779
    %1781 = vrot.lane.b32.xlu0 %v1776, 64
    %v1782 = vpop.permute.xlu0 %1781
    %1783 = vrot.lane.b32.xlu0 %v1780, 64
    %v1784 = vpop.permute.xlu0 %1783
    %1787 = vst.msk [vmem:[#allocation5 + $0x5] sm:$0x1] %vm351, %v1782
    %1788 = vst.msk [vmem:[#allocation5 + $0xd] sm:$0x1] %vm351, %v1784
    %s1789 = scalar_lea.vmem %s0, 56
    %v1790 = vld [vmem:[%s1789] sm:$0xff]
    %v1791 = vld [vmem:[#allocation2] sm:$0xff]
    %v1792 = vld [vmem:[#allocation2 + $0x8] sm:$0xff]
    %v1793 = vld [vmem:[#allocation2 + $0x10] sm:$0xff]
    %v1794 = vld [vmem:[#allocation2 + $0x18] sm:$0xff]
    %v1795 = vld [vmem:[#allocation2 + $0x20] sm:$0xff]
    %v1796 = vld [vmem:[#allocation2 + $0x28] sm:$0xff]
    %v1797 = vld [vmem:[#allocation2 + $0x30] sm:$0xff]
    %v1798 = vld [vmem:[#allocation2 + $0x38] sm:$0xff]
    %v1799 = vld [vmem:[#allocation2 + $0x40] sm:$0xff]
    %v1800 = vld [vmem:[#allocation2 + $0x48] sm:$0xff]
    %v1801 = vld [vmem:[#allocation2 + $0x50] sm:$0xff]
    %v1802 = vld [vmem:[#allocation2 + $0x58] sm:$0xff]
    %v1803 = vld [vmem:[#allocation2 + $0x60] sm:$0xff]
    %v1804 = vld [vmem:[#allocation2 + $0x68] sm:$0xff]
    %v1805 = vld [vmem:[#allocation2 + $0x70] sm:$0xff]
    %v1806 = vld [vmem:[#allocation2 + $0x78] sm:$0xff]
    %v1807 = vld [vmem:[#allocation2 + $0x80] sm:$0xff]
    %v1808 = vld [vmem:[#allocation2 + $0x88] sm:$0xff]
    %v1809 = vld [vmem:[#allocation2 + $0x90] sm:$0xff]
    %v1810 = vld [vmem:[#allocation2 + $0x98] sm:$0xff]
    %v1811 = vld [vmem:[#allocation2 + $0xa0] sm:$0xff]
    %v1812 = vld [vmem:[#allocation2 + $0xa8] sm:$0xff]
    %v1813 = vld [vmem:[#allocation2 + $0xb0] sm:$0xff]
    %v1814 = vld [vmem:[#allocation2 + $0xb8] sm:$0xff]
    %v1815 = vld [vmem:[#allocation2 + $0xc0] sm:$0xff]
    %v1816 = vld [vmem:[#allocation2 + $0xc8] sm:$0xff]
    %v1817 = vld [vmem:[#allocation2 + $0xd0] sm:$0xff]
    %v1818 = vld [vmem:[#allocation2 + $0xd8] sm:$0xff]
    %v1819 = vld [vmem:[#allocation2 + $0xe0] sm:$0xff]
    %v1820 = vld [vmem:[#allocation2 + $0xe8] sm:$0xff]
    %v1821 = vld [vmem:[#allocation2 + $0xf0] sm:$0xff]
    %v1822 = vld [vmem:[#allocation2 + $0xf8] sm:$0xff]
    %v1823 = vld [vmem:[#allocation2 + $0x100] sm:$0xff]
    %v1824 = vld [vmem:[#allocation2 + $0x108] sm:$0xff]
    %v1825 = vld [vmem:[#allocation2 + $0x110] sm:$0xff]
    %v1826 = vld [vmem:[#allocation2 + $0x118] sm:$0xff]
    %v1827 = vld [vmem:[#allocation2 + $0x120] sm:$0xff]
    %v1828 = vld [vmem:[#allocation2 + $0x128] sm:$0xff]
    %v1829 = vld [vmem:[#allocation2 + $0x130] sm:$0xff]
    %v1830 = vld [vmem:[#allocation2 + $0x138] sm:$0xff]
    %v1831 = vld [vmem:[#allocation2 + $0x140] sm:$0xff]
    %v1832 = vld [vmem:[#allocation2 + $0x148] sm:$0xff]
    %v1833 = vld [vmem:[#allocation2 + $0x150] sm:$0xff]
    %v1834 = vld [vmem:[#allocation2 + $0x158] sm:$0xff]
    %v1835 = vld [vmem:[#allocation2 + $0x160] sm:$0xff]
    %v1836 = vld [vmem:[#allocation2 + $0x168] sm:$0xff]
    %v1837 = vld [vmem:[#allocation2 + $0x170] sm:$0xff]
    %v1838 = vld [vmem:[#allocation2 + $0x178] sm:$0xff]
    %v1839 = vld [vmem:[#allocation2 + $0x180] sm:$0xff]
    %v1840 = vld [vmem:[#allocation2 + $0x188] sm:$0xff]
    %v1841 = vld [vmem:[#allocation2 + $0x190] sm:$0xff]
    %v1842 = vld [vmem:[#allocation2 + $0x198] sm:$0xff]
    %v1843 = vld [vmem:[#allocation2 + $0x1a0] sm:$0xff]
    %v1844 = vld [vmem:[#allocation2 + $0x1a8] sm:$0xff]
    %v1845 = vld [vmem:[#allocation2 + $0x1b0] sm:$0xff]
    %v1846 = vld [vmem:[#allocation2 + $0x1b8] sm:$0xff]
    %v1847 = vld [vmem:[#allocation2 + $0x1c0] sm:$0xff]
    %v1848 = vld [vmem:[#allocation2 + $0x1c8] sm:$0xff]
    %v1849 = vld [vmem:[#allocation2 + $0x1d0] sm:$0xff]
    %v1850 = vld [vmem:[#allocation2 + $0x1d8] sm:$0xff]
    %v1851 = vld [vmem:[#allocation2 + $0x1e0] sm:$0xff]
    %v1852 = vld [vmem:[#allocation2 + $0x1e8] sm:$0xff]
    %v1853 = vld [vmem:[#allocation2 + $0x1f0] sm:$0xff]
    %v1854 = vld [vmem:[#allocation2 + $0x1f8] sm:$0xff]
    %1855 = vmatprep.subr.mxu0 %v1792
    %1856 = vmatpush1.msra.mxu0 %v1791
    %1857 = vmatprep.subr.mxu0 %v1796
    %1858 = vmatpush1.msra.mxu0 %v1795
    %1859 = vmatprep.subr.mxu0 %v1800
    %1860 = vmatpush1.msra.mxu0 %v1799
    %1861 = vmatprep.subr.mxu0 %v1804
    %1862 = vmatpush1.msra.mxu0 %v1803
    %1863 = vmatprep.subr.mxu0 %v1808
    %1864 = vmatpush1.msra.mxu0 %v1807
    %1865 = vmatprep.subr.mxu0 %v1812
    %1866 = vmatpush1.msra.mxu0 %v1811
    %1867 = vmatprep.subr.mxu0 %v1816
    %1868 = vmatpush1.msra.mxu0 %v1815
    %1869 = vmatprep.subr.mxu0 %v1820
    %1870 = vmatpush1.msra.mxu0 %v1819
    %1871 = vmatprep.subr.mxu0 %v1824
    %1872 = vmatpush1.msra.mxu0 %v1823
    %1873 = vmatprep.subr.mxu0 %v1828
    %1874 = vmatpush1.msra.mxu0 %v1827
    %1875 = vmatprep.subr.mxu0 %v1832
    %1876 = vmatpush1.msra.mxu0 %v1831
    %1877 = vmatprep.subr.mxu0 %v1836
    %1878 = vmatpush1.msra.mxu0 %v1835
    %1879 = vmatprep.subr.mxu0 %v1840
    %1880 = vmatpush1.msra.mxu0 %v1839
    %1881 = vmatprep.subr.mxu0 %v1844
    %1882 = vmatpush1.msra.mxu0 %v1843
    %1883 = vmatprep.subr.mxu0 %v1848
    %1884 = vmatpush1.msra.mxu0 %v1847
    %1885 = vmatprep.subr.mxu0 %v1852
    %1886 = vmatpush1.msra.mxu0 %v1851
    %1887 = vmatprep.subr.mxu0 0.0
    %1888 = vmatpush1.msra.mxu0 0.0
    %1889 = vmatprep.subr.mxu0 0.0
    %1890 = vmatpush1.msra.mxu0 0.0
    %1891 = vmatprep.subr.mxu0 0.0
    %1892 = vmatpush1.msra.mxu0 0.0
    %1893 = vmatprep.subr.mxu0 0.0
    %1894 = vmatpush1.msra.mxu0 0.0
    %1895 = vmatprep.subr.mxu0 0.0
    %1896 = vmatpush1.msra.mxu0 0.0
    %1897 = vmatprep.subr.mxu0 0.0
    %1898 = vmatpush1.msra.mxu0 0.0
    %1899 = vmatprep.subr.mxu0 0.0
    %1900 = vmatpush1.msra.mxu0 0.0
    %1901 = vmatprep.subr.mxu0 0.0
    %1902 = vmatpush1.msra.mxu0 0.0
    %1903 = vmatprep.subr.mxu0 0.0
    %1904 = vmatpush1.msra.mxu0 0.0
    %1905 = vmatprep.subr.mxu0 0.0
    %1906 = vmatpush1.msra.mxu0 0.0
    %1907 = vmatprep.subr.mxu0 0.0
    %1908 = vmatpush1.msra.mxu0 0.0
    %1909 = vmatprep.subr.mxu0 0.0
    %1910 = vmatpush1.msra.mxu0 0.0
    %1911 = vmatprep.subr.mxu0 0.0
    %1912 = vmatpush1.msra.mxu0 0.0
    %1913 = vmatprep.subr.mxu0 0.0
    %1914 = vmatpush1.msra.mxu0 0.0
    %1915 = vmatprep.subr.mxu0 0.0
    %1916 = vmatpush1.msra.mxu0 0.0
    %1917 = vmatprep.subr.mxu0 0.0
    %1918 = vmatpush1.msra.mxu0 0.0
    %1919 = vmatprep.mubr.f32.mxu0 0.0
    %1920 = vmatmul.mubr.f32.gmra.mrb[0].mxu0 %v1763
    %v1921 = vpop.f32.mrb[0].mxu0
    %v1922 = vadd.f32 0.0, %v1921
    %v1923 = vpop.f32.mrb[0].mxu0
    %v1924 = vadd.f32 0.0, %v1923
    %1925 = vdwg.mxu0
    %1926 = vmatprep.subr.mxu0 %v1794
    %1927 = vmatpush1.msra.mxu0 %v1793
    %1928 = vmatprep.subr.mxu0 %v1798
    %1929 = vmatpush1.msra.mxu0 %v1797
    %1930 = vmatprep.subr.mxu0 %v1802
    %1931 = vmatpush1.msra.mxu0 %v1801
    %1932 = vmatprep.subr.mxu0 %v1806
    %1933 = vmatpush1.msra.mxu0 %v1805
    %1934 = vmatprep.subr.mxu0 %v1810
    %1935 = vmatpush1.msra.mxu0 %v1809
    %1936 = vmatprep.subr.mxu0 %v1814
    %1937 = vmatpush1.msra.mxu0 %v1813
    %1938 = vmatprep.subr.mxu0 %v1818
    %1939 = vmatpush1.msra.mxu0 %v1817
    %1940 = vmatprep.subr.mxu0 %v1822
    %1941 = vmatpush1.msra.mxu0 %v1821
    %1942 = vmatprep.subr.mxu0 %v1826
    %1943 = vmatpush1.msra.mxu0 %v1825
    %1944 = vmatprep.subr.mxu0 %v1830
    %1945 = vmatpush1.msra.mxu0 %v1829
    %1946 = vmatprep.subr.mxu0 %v1834
    %1947 = vmatpush1.msra.mxu0 %v1833
    %1948 = vmatprep.subr.mxu0 %v1838
    %1949 = vmatpush1.msra.mxu0 %v1837
    %1950 = vmatprep.subr.mxu0 %v1842
    %1951 = vmatpush1.msra.mxu0 %v1841
    %1952 = vmatprep.subr.mxu0 %v1846
    %1953 = vmatpush1.msra.mxu0 %v1845
    %1954 = vmatprep.subr.mxu0 %v1850
    %1955 = vmatpush1.msra.mxu0 %v1849
    %1956 = vmatprep.subr.mxu0 %v1854
    %1957 = vmatpush1.msra.mxu0 %v1853
    %1958 = vmatprep.subr.mxu0 0.0
    %1959 = vmatpush1.msra.mxu0 0.0
    %1960 = vmatprep.subr.mxu0 0.0
    %1961 = vmatpush1.msra.mxu0 0.0
    %1962 = vmatprep.subr.mxu0 0.0
    %1963 = vmatpush1.msra.mxu0 0.0
    %1964 = vmatprep.subr.mxu0 0.0
    %1965 = vmatpush1.msra.mxu0 0.0
    %1966 = vmatprep.subr.mxu0 0.0
    %1967 = vmatpush1.msra.mxu0 0.0
    %1968 = vmatprep.subr.mxu0 0.0
    %1969 = vmatpush1.msra.mxu0 0.0
    %1970 = vmatprep.subr.mxu0 0.0
    %1971 = vmatpush1.msra.mxu0 0.0
    %1972 = vmatprep.subr.mxu0 0.0
    %1973 = vmatpush1.msra.mxu0 0.0
    %1974 = vmatprep.subr.mxu0 0.0
    %1975 = vmatpush1.msra.mxu0 0.0
    %1976 = vmatprep.subr.mxu0 0.0
    %1977 = vmatpush1.msra.mxu0 0.0
    %1978 = vmatprep.subr.mxu0 0.0
    %1979 = vmatpush1.msra.mxu0 0.0
    %1980 = vmatprep.subr.mxu0 0.0
    %1981 = vmatpush1.msra.mxu0 0.0
    %1982 = vmatprep.subr.mxu0 0.0
    %1983 = vmatpush1.msra.mxu0 0.0
    %1984 = vmatprep.subr.mxu0 0.0
    %1985 = vmatpush1.msra.mxu0 0.0
    %1986 = vmatprep.subr.mxu0 0.0
    %1987 = vmatpush1.msra.mxu0 0.0
    %1988 = vmatprep.subr.mxu0 0.0
    %1989 = vmatpush1.msra.mxu0 0.0
    %1990 = vmatprep.mubr.f32.mxu0 0.0
    %1991 = vmatmul.mubr.f32.gmra.mrb[0].mxu0 %v1763
    %v1992 = vpop.f32.mrb[0].mxu0
    %v1993 = vadd.f32 0.0, %v1992
    %v1994 = vpop.f32.mrb[0].mxu0
    %v1995 = vadd.f32 0.0, %v1994
    %1996 = vdwg.mxu0
    %v2001 = vcombine.low %v1922, %v1924
    %v2002 = vcombine.low %v1993, %v1995
    %v2004 = vunpack.c.l.s4 1983009808
    %v2005 = vunpack.c.0.s8 %v2004
    %v2006 = vlaneseq
    %v2007 = vshrl.u32 %v2006, 7
    %v2008 = vsub.s32 %v2005, %v2007
    %v2009 = vrot.slane %v2001, %v2008
    %v2011 = vunpack.c.l.s4 1983009808
    %v2012 = vunpack.c.0.s8 %v2011
    %v2013 = vlaneseq
    %v2014 = vshrl.u32 %v2013, 7
    %v2015 = vsub.s32 %v2012, %v2014
    %v2016 = vrot.slane %v2002, %v2015
    %v2017 = vcombine.low %v2009, %v2016
    %v2019 = vadd.f32 %v1790, %v2017
    %v2020 = vxor.u32 %v2019, 2147483648
    %v2021 = vmul.f32 %v2020, 1.442695
    %v2022 = vpow.pop %v2021
    %v2023 = vadd.f32 %v2022, 1.0
    %v2024 = vrcp.pop %v2023
    %v2025 = vmul.f32 1.0, %v2024
    %v2027 = vrot.slane %v2019, 2
    %v2029 = vxor.u32 %v2027, 2147483648
    %v2030 = vmul.f32 %v2029, 1.442695
    %v2031 = vpow.pop %v2030
    %v2032 = vadd.f32 %v2031, 1.0
    %v2033 = vrcp.pop %v2032
    %v2034 = vmul.f32 1.0, %v2033
    %v2035 = vrot.slane %v2019, 4
    %v2037 = vtanh.pop %v2035
    %v2038 = vrot.slane %v2019, 6
    %v2040 = vxor.u32 %v2038, 2147483648
    %v2041 = vmul.f32 %v2040, 1.442695
    %v2042 = vpow.pop %v2041
    %v2043 = vadd.f32 %v2042, 1.0
    %v2044 = vrcp.pop %v2043
    %v2045 = vmul.f32 1.0, %v2044
    %v2046 = vmul.f32 %v2034, %v1761
    %v2047 = vmul.f32 %v2025, %v2037
    %v2048 = vadd.f32 %v2046, %v2047
    %v2049 = vtanh.pop %v2048
    %v2050 = vmul.f32 %v2045, %v2049
    %v2053 = vunpack.c.l.s4 1966171168
    %v2054 = vunpack.c.0.s8 %v2053
    %v2055 = vlaneseq
    %v2056 = vshrl.u32 %v2055, 7
    %v2057 = vsub.s32 %v2054, %v2056
    %v2058 = vrot.slane %v2050, %v2057
    %v2059 = vcombine.high %v2058, %v2058
    %v2060 = vlaneseq
    %v2061 = vshrl.u32 %v2060, 7
    %v2062 = vsub.s32 0, %v2061
    %v2063 = vrot.slane %v2058, %v2062
    %v2064 = vlaneseq
    %v2065 = vshrl.u32 %v2064, 7
    %v2066 = vsub.s32 0, %v2065
    %v2067 = vrot.slane %v2059, %v2066
    %2068 = vrot.lane.b32.xlu0 %v2063, 64
    %v2069 = vpop.permute.xlu0 %2068
    %2070 = vrot.lane.b32.xlu0 %v2067, 64
    %v2071 = vpop.permute.xlu0 %2070
    %2074 = vst.msk [vmem:[#allocation5 + $0x6] sm:$0x1] %vm351, %v2069
    %2075 = vst.msk [vmem:[#allocation5 + $0xe] sm:$0x1] %vm351, %v2071
    %v2076 = vld [vmem:[%s2] sm:$0xf]
    %v2077 = vld [vmem:[#allocation2] sm:$0xff]
    %v2078 = vld [vmem:[#allocation2 + $0x8] sm:$0xff]
    %v2079 = vld [vmem:[#allocation2 + $0x10] sm:$0xff]
    %v2080 = vld [vmem:[#allocation2 + $0x18] sm:$0xff]
    %v2081 = vld [vmem:[#allocation2 + $0x20] sm:$0xff]
    %v2082 = vld [vmem:[#allocation2 + $0x28] sm:$0xff]
    %v2083 = vld [vmem:[#allocation2 + $0x30] sm:$0xff]
    %v2084 = vld [vmem:[#allocation2 + $0x38] sm:$0xff]
    %v2085 = vld [vmem:[#allocation2 + $0x40] sm:$0xff]
    %v2086 = vld [vmem:[#allocation2 + $0x48] sm:$0xff]
    %v2087 = vld [vmem:[#allocation2 + $0x50] sm:$0xff]
    %v2088 = vld [vmem:[#allocation2 + $0x58] sm:$0xff]
    %v2089 = vld [vmem:[#allocation2 + $0x60] sm:$0xff]
    %v2090 = vld [vmem:[#allocation2 + $0x68] sm:$0xff]
    %v2091 = vld [vmem:[#allocation2 + $0x70] sm:$0xff]
    %v2092 = vld [vmem:[#allocation2 + $0x78] sm:$0xff]
    %v2093 = vld [vmem:[#allocation2 + $0x80] sm:$0xff]
    %v2094 = vld [vmem:[#allocation2 + $0x88] sm:$0xff]
    %v2095 = vld [vmem:[#allocation2 + $0x90] sm:$0xff]
    %v2096 = vld [vmem:[#allocation2 + $0x98] sm:$0xff]
    %v2097 = vld [vmem:[#allocation2 + $0xa0] sm:$0xff]
    %v2098 = vld [vmem:[#allocation2 + $0xa8] sm:$0xff]
    %v2099 = vld [vmem:[#allocation2 + $0xb0] sm:$0xff]
    %v2100 = vld [vmem:[#allocation2 + $0xb8] sm:$0xff]
    %v2101 = vld [vmem:[#allocation2 + $0xc0] sm:$0xff]
    %v2102 = vld [vmem:[#allocation2 + $0xc8] sm:$0xff]
    %v2103 = vld [vmem:[#allocation2 + $0xd0] sm:$0xff]
    %v2104 = vld [vmem:[#allocation2 + $0xd8] sm:$0xff]
    %v2105 = vld [vmem:[#allocation2 + $0xe0] sm:$0xff]
    %v2106 = vld [vmem:[#allocation2 + $0xe8] sm:$0xff]
    %v2107 = vld [vmem:[#allocation2 + $0xf0] sm:$0xff]
    %v2108 = vld [vmem:[#allocation2 + $0xf8] sm:$0xff]
    %v2109 = vld [vmem:[#allocation2 + $0x100] sm:$0xff]
    %v2110 = vld [vmem:[#allocation2 + $0x108] sm:$0xff]
    %v2111 = vld [vmem:[#allocation2 + $0x110] sm:$0xff]
    %v2112 = vld [vmem:[#allocation2 + $0x118] sm:$0xff]
    %v2113 = vld [vmem:[#allocation2 + $0x120] sm:$0xff]
    %v2114 = vld [vmem:[#allocation2 + $0x128] sm:$0xff]
    %v2115 = vld [vmem:[#allocation2 + $0x130] sm:$0xff]
    %v2116 = vld [vmem:[#allocation2 + $0x138] sm:$0xff]
    %v2117 = vld [vmem:[#allocation2 + $0x140] sm:$0xff]
    %v2118 = vld [vmem:[#allocation2 + $0x148] sm:$0xff]
    %v2119 = vld [vmem:[#allocation2 + $0x150] sm:$0xff]
    %v2120 = vld [vmem:[#allocation2 + $0x158] sm:$0xff]
    %v2121 = vld [vmem:[#allocation2 + $0x160] sm:$0xff]
    %v2122 = vld [vmem:[#allocation2 + $0x168] sm:$0xff]
    %v2123 = vld [vmem:[#allocation2 + $0x170] sm:$0xff]
    %v2124 = vld [vmem:[#allocation2 + $0x178] sm:$0xff]
    %v2125 = vld [vmem:[#allocation2 + $0x180] sm:$0xff]
    %v2126 = vld [vmem:[#allocation2 + $0x188] sm:$0xff]
    %v2127 = vld [vmem:[#allocation2 + $0x190] sm:$0xff]
    %v2128 = vld [vmem:[#allocation2 + $0x198] sm:$0xff]
    %v2129 = vld [vmem:[#allocation2 + $0x1a0] sm:$0xff]
    %v2130 = vld [vmem:[#allocation2 + $0x1a8] sm:$0xff]
    %v2131 = vld [vmem:[#allocation2 + $0x1b0] sm:$0xff]
    %v2132 = vld [vmem:[#allocation2 + $0x1b8] sm:$0xff]
    %v2133 = vld [vmem:[#allocation2 + $0x1c0] sm:$0xff]
    %v2134 = vld [vmem:[#allocation2 + $0x1c8] sm:$0xff]
    %v2135 = vld [vmem:[#allocation2 + $0x1d0] sm:$0xff]
    %v2136 = vld [vmem:[#allocation2 + $0x1d8] sm:$0xff]
    %v2137 = vld [vmem:[#allocation2 + $0x1e0] sm:$0xff]
    %v2138 = vld [vmem:[#allocation2 + $0x1e8] sm:$0xff]
    %v2139 = vld [vmem:[#allocation2 + $0x1f0] sm:$0xff]
    %v2140 = vld [vmem:[#allocation2 + $0x1f8] sm:$0xff]
    %2141 = vmatprep.subr.mxu0 %v2078
    %2142 = vmatpush1.msra.mxu0 %v2077
    %2143 = vmatprep.subr.mxu0 %v2082
    %2144 = vmatpush1.msra.mxu0 %v2081
    %2145 = vmatprep.subr.mxu0 %v2086
    %2146 = vmatpush1.msra.mxu0 %v2085
    %2147 = vmatprep.subr.mxu0 %v2090
    %2148 = vmatpush1.msra.mxu0 %v2089
    %2149 = vmatprep.subr.mxu0 %v2094
    %2150 = vmatpush1.msra.mxu0 %v2093
    %2151 = vmatprep.subr.mxu0 %v2098
    %2152 = vmatpush1.msra.mxu0 %v2097
    %2153 = vmatprep.subr.mxu0 %v2102
    %2154 = vmatpush1.msra.mxu0 %v2101
    %2155 = vmatprep.subr.mxu0 %v2106
    %2156 = vmatpush1.msra.mxu0 %v2105
    %2157 = vmatprep.subr.mxu0 %v2110
    %2158 = vmatpush1.msra.mxu0 %v2109
    %2159 = vmatprep.subr.mxu0 %v2114
    %2160 = vmatpush1.msra.mxu0 %v2113
    %2161 = vmatprep.subr.mxu0 %v2118
    %2162 = vmatpush1.msra.mxu0 %v2117
    %2163 = vmatprep.subr.mxu0 %v2122
    %2164 = vmatpush1.msra.mxu0 %v2121
    %2165 = vmatprep.subr.mxu0 %v2126
    %2166 = vmatpush1.msra.mxu0 %v2125
    %2167 = vmatprep.subr.mxu0 %v2130
    %2168 = vmatpush1.msra.mxu0 %v2129
    %2169 = vmatprep.subr.mxu0 %v2134
    %2170 = vmatpush1.msra.mxu0 %v2133
    %2171 = vmatprep.subr.mxu0 %v2138
    %2172 = vmatpush1.msra.mxu0 %v2137
    %2173 = vmatprep.subr.mxu0 0.0
    %2174 = vmatpush1.msra.mxu0 0.0
    %2175 = vmatprep.subr.mxu0 0.0
    %2176 = vmatpush1.msra.mxu0 0.0
    %2177 = vmatprep.subr.mxu0 0.0
    %2178 = vmatpush1.msra.mxu0 0.0
    %2179 = vmatprep.subr.mxu0 0.0
    %2180 = vmatpush1.msra.mxu0 0.0
    %2181 = vmatprep.subr.mxu0 0.0
    %2182 = vmatpush1.msra.mxu0 0.0
    %2183 = vmatprep.subr.mxu0 0.0
    %2184 = vmatpush1.msra.mxu0 0.0
    %2185 = vmatprep.subr.mxu0 0.0
    %2186 = vmatpush1.msra.mxu0 0.0
    %2187 = vmatprep.subr.mxu0 0.0
    %2188 = vmatpush1.msra.mxu0 0.0
    %2189 = vmatprep.subr.mxu0 0.0
    %2190 = vmatpush1.msra.mxu0 0.0
    %2191 = vmatprep.subr.mxu0 0.0
    %2192 = vmatpush1.msra.mxu0 0.0
    %2193 = vmatprep.subr.mxu0 0.0
    %2194 = vmatpush1.msra.mxu0 0.0
    %2195 = vmatprep.subr.mxu0 0.0
    %2196 = vmatpush1.msra.mxu0 0.0
    %2197 = vmatprep.subr.mxu0 0.0
    %2198 = vmatpush1.msra.mxu0 0.0
    %2199 = vmatprep.subr.mxu0 0.0
    %2200 = vmatpush1.msra.mxu0 0.0
    %2201 = vmatprep.subr.mxu0 0.0
    %2202 = vmatpush1.msra.mxu0 0.0
    %2203 = vmatprep.subr.mxu0 0.0
    %2204 = vmatpush1.msra.mxu0 0.0
    %2205 = vmatprep.mubr.f32.mxu0 0.0
    %2206 = vmatmul.mubr.f32.gmra.mrb[0].mxu0 %v2050
    %v2207 = vpop.f32.mrb[0].mxu0
    %v2208 = vadd.f32 0.0, %v2207
    %v2209 = vpop.f32.mrb[0].mxu0
    %v2210 = vadd.f32 0.0, %v2209
    %2211 = vdwg.mxu0
    %2212 = vmatprep.subr.mxu0 %v2080
    %2213 = vmatpush1.msra.mxu0 %v2079
    %2214 = vmatprep.subr.mxu0 %v2084
    %2215 = vmatpush1.msra.mxu0 %v2083
    %2216 = vmatprep.subr.mxu0 %v2088
    %2217 = vmatpush1.msra.mxu0 %v2087
    %2218 = vmatprep.subr.mxu0 %v2092
    %2219 = vmatpush1.msra.mxu0 %v2091
    %2220 = vmatprep.subr.mxu0 %v2096
    %2221 = vmatpush1.msra.mxu0 %v2095
    %2222 = vmatprep.subr.mxu0 %v2100
    %2223 = vmatpush1.msra.mxu0 %v2099
    %2224 = vmatprep.subr.mxu0 %v2104
    %2225 = vmatpush1.msra.mxu0 %v2103
    %2226 = vmatprep.subr.mxu0 %v2108
    %2227 = vmatpush1.msra.mxu0 %v2107
    %2228 = vmatprep.subr.mxu0 %v2112
    %2229 = vmatpush1.msra.mxu0 %v2111
    %2230 = vmatprep.subr.mxu0 %v2116
    %2231 = vmatpush1.msra.mxu0 %v2115
    %2232 = vmatprep.subr.mxu0 %v2120
    %2233 = vmatpush1.msra.mxu0 %v2119
    %2234 = vmatprep.subr.mxu0 %v2124
    %2235 = vmatpush1.msra.mxu0 %v2123
    %2236 = vmatprep.subr.mxu0 %v2128
    %2237 = vmatpush1.msra.mxu0 %v2127
    %2238 = vmatprep.subr.mxu0 %v2132
    %2239 = vmatpush1.msra.mxu0 %v2131
    %2240 = vmatprep.subr.mxu0 %v2136
    %2241 = vmatpush1.msra.mxu0 %v2135
    %2242 = vmatprep.subr.mxu0 %v2140
    %2243 = vmatpush1.msra.mxu0 %v2139
    %2244 = vmatprep.subr.mxu0 0.0
    %2245 = vmatpush1.msra.mxu0 0.0
    %2246 = vmatprep.subr.mxu0 0.0
    %2247 = vmatpush1.msra.mxu0 0.0
    %2248 = vmatprep.subr.mxu0 0.0
    %2249 = vmatpush1.msra.mxu0 0.0
    %2250 = vmatprep.subr.mxu0 0.0
    %2251 = vmatpush1.msra.mxu0 0.0
    %2252 = vmatprep.subr.mxu0 0.0
    %2253 = vmatpush1.msra.mxu0 0.0
    %2254 = vmatprep.subr.mxu0 0.0
    %2255 = vmatpush1.msra.mxu0 0.0
    %2256 = vmatprep.subr.mxu0 0.0
    %2257 = vmatpush1.msra.mxu0 0.0
    %2258 = vmatprep.subr.mxu0 0.0
    %2259 = vmatpush1.msra.mxu0 0.0
    %2260 = vmatprep.subr.mxu0 0.0
    %2261 = vmatpush1.msra.mxu0 0.0
    %2262 = vmatprep.subr.mxu0 0.0
    %2263 = vmatpush1.msra.mxu0 0.0
    %2264 = vmatprep.subr.mxu0 0.0
    %2265 = vmatpush1.msra.mxu0 0.0
    %2266 = vmatprep.subr.mxu0 0.0
    %2267 = vmatpush1.msra.mxu0 0.0
    %2268 = vmatprep.subr.mxu0 0.0
    %2269 = vmatpush1.msra.mxu0 0.0
    %2270 = vmatprep.subr.mxu0 0.0
    %2271 = vmatpush1.msra.mxu0 0.0
    %2272 = vmatprep.subr.mxu0 0.0
    %2273 = vmatpush1.msra.mxu0 0.0
    %2274 = vmatprep.subr.mxu0 0.0
    %2275 = vmatpush1.msra.mxu0 0.0
    %2276 = vmatprep.mubr.f32.mxu0 0.0
    %2277 = vmatmul.mubr.f32.gmra.mrb[0].mxu0 %v2050
    %v2278 = vpop.f32.mrb[0].mxu0
    %v2279 = vadd.f32 0.0, %v2278
    %v2280 = vpop.f32.mrb[0].mxu0
    %v2281 = vadd.f32 0.0, %v2280
    %2282 = vdwg.mxu0
    %v2284 = vlaneseq
    %v2285 = vshrl.u32 %v2284, 7
    %v2286 = vsub.s32 0, %v2285
    %v2287 = vrot.slane %v2076, %v2286
    %v2288 = vlaneseq
    %v2289 = vshrl.u32 %v2288, 7
    %v2290 = vsub.s32 1, %v2289
    %v2291 = vrot.slane %v2076, %v2290
    %v2292 = vlaneseq
    %v2293 = vshrl.u32 %v2292, 7
    %v2294 = vsub.s32 2, %v2293
    %v2295 = vrot.slane %v2076, %v2294
    %v2296 = vlaneseq
    %v2297 = vshrl.u32 %v2296, 7
    %v2298 = vsub.s32 3, %v2297
    %v2299 = vrot.slane %v2076, %v2298
    %v2304 = vadd.f32 %v2287, %v2208
    %v2305 = vadd.f32 %v2291, %v2210
    %v2306 = vadd.f32 %v2295, %v2279
    %v2307 = vadd.f32 %v2299, %v2281
    %v2308 = vxor.u32 %v2304, 2147483648
    %v2309 = vmul.f32 %v2308, 1.442695
    %v2310 = vpow.pop %v2309
    %v2311 = vadd.f32 %v2310, 1.0
    %v2312 = vrcp.pop %v2311
    %v2313 = vmul.f32 1.0, %v2312
    %v2314 = vxor.u32 %v2305, 2147483648
    %v2315 = vmul.f32 %v2314, 1.442695
    %v2316 = vpow.pop %v2315
    %v2317 = vadd.f32 %v2316, 1.0
    %v2318 = vrcp.pop %v2317
    %v2319 = vmul.f32 1.0, %v2318
    %v2320 = vtanh.pop %v2306
    %v2321 = vxor.u32 %v2307, 2147483648
    %v2322 = vmul.f32 %v2321, 1.442695
    %v2323 = vpow.pop %v2322
    %v2324 = vadd.f32 %v2323, 1.0
    %v2325 = vrcp.pop %v2324
    %v2326 = vmul.f32 1.0, %v2325
    %v2327 = vmul.f32 %v2319, %v2048
    %v2328 = vmul.f32 %v2313, %v2320
    %v2329 = vadd.f32 %v2327, %v2328
    %v2330 = vtanh.pop %v2329
    %v2331 = vmul.f32 %v2326, %v2330
    %v2334 = vunpack.c.l.s4 1966171168
    %v2335 = vunpack.c.0.s8 %v2334
    %v2336 = vlaneseq
    %v2337 = vshrl.u32 %v2336, 7
    %v2338 = vsub.s32 %v2335, %v2337
    %v2339 = vrot.slane %v2331, %v2338
    %v2340 = vcombine.high %v2339, %v2339
    %v2342 = vunpack.c.l.s4 1966171168
    %v2343 = vunpack.c.0.s8 %v2342
    %v2344 = vlaneseq
    %v2345 = vshrl.u32 %v2344, 7
    %v2346 = vsub.s32 %v2343, %v2345
    %v2347 = vrot.slane %v2339, %v2346
    %v2349 = vunpack.c.l.s4 1966171168
    %v2350 = vunpack.c.0.s8 %v2349
    %v2351 = vlaneseq
    %v2352 = vshrl.u32 %v2351, 7
    %v2353 = vsub.s32 %v2350, %v2352
    %v2354 = vrot.slane %v2340, %v2353
    %v2355 = vlaneseq
    %v2356 = vshrl.u32 %v2355, 7
    %v2357 = vsub.s32 0, %v2356
    %v2358 = vrot.slane %v2347, %v2357
    %v2359 = vlaneseq
    %v2360 = vshrl.u32 %v2359, 7
    %v2361 = vsub.s32 0, %v2360
    %v2362 = vrot.slane %v2354, %v2361
    %2363 = vrot.lane.b32.xlu0 %v2358, 64
    %v2364 = vpop.permute.xlu0 %2363
    %2365 = vrot.lane.b32.xlu0 %v2362, 64
    %v2366 = vpop.permute.xlu0 %2365
    %2369 = vst.msk [vmem:[#allocation5 + $0x7] sm:$0x1] %vm351, %v2364
    %2370 = vst.msk [vmem:[#allocation5 + $0xf] sm:$0x1] %vm351, %v2366
    // Predicated region
    $region18: #{rnn_forward.1} parent=1 // pred_check
      _
    $region19: #{rnn_forward.1} parent=1 // pred_check_branch
      %2372 = sbr.rel (0) target = $region21
    $region20: #{rnn_forward.1} parent=1 // pred_region
      %s2374 = ssub.s32 256, 256
      %2375 = vsyncadd [#allocation4], %s2374
      %s2376 = sshll.u32 [#allocation5], 4
      %s2377 = int_to_ptr.vmem [resolvable:$true] %s2376
      %2382 = dma.vmem_to_hbm [thread:$0]  %s2377, 256, %s3, [#allocation4], 128, 128, 8
    $region21: #{rnn_forward.1} parent=1 // pred_fallthru
      _
    // Predicated region
    $region22: #{rnn_forward.1} parent=1 // pred_check
      _
    $region23: #{rnn_forward.1} parent=1 // pred_check_branch
      %2384 = sbr.rel (0) target = $region25
    $region24: #{rnn_forward.1} parent=1 // pred_region
      %2385 = dma.done [#allocation4], 256
    $region25: #{rnn_forward.1} parent=1 // pred_fallthru
      _
    %2386 = vsyncpa [#allocation3], 1
    %2387 = vsyncpa [#allocation4], 1

</llo_original>
